<compile_context>
chip_gen: v5e
topology: v5e:2x2
jax: 0.10.0
libtpu: 0.0.40
codegen_flags: <defaults>
</compile_context>

<pallas_src>
import functools
import math

import jax
import jax.numpy as jnp
from jax.experimental import pallas as pl
from jax.experimental.pallas import tpu as pltpu

NORM_EPS = 1e-5
ROPE_THETA = 10000.0


# ---------------------------------------------------------------------------
# In-kernel helpers (f32 elementwise math)
# ---------------------------------------------------------------------------
def _erf(x):
    # Abramowitz & Stegun 7.1.26 rational approximation (max abs err ~1.5e-7),
    # built only from mul/add/div/exp/abs/sign so it always lowers in Mosaic.
    a1, a2, a3, a4, a5 = (0.254829592, -0.284496736, 1.421413741,
                          -1.453152027, 1.061405429)
    p = 0.3275911
    s = jnp.sign(x)
    z = jnp.abs(x)
    t = 1.0 / (1.0 + p * z)
    poly = ((((a5 * t + a4) * t + a3) * t + a2) * t + a1) * t
    return s * (1.0 - poly * jnp.exp(-z * z))


def _gelu_exact(x):
    # F.gelu default (approximate='none'): 0.5 * x * (1 + erf(x / sqrt(2)))
    return 0.5 * x * (1.0 + _erf(x * (2.0 ** -0.5)))


def _rmsnorm(x, w, eps):
    # Exactly the PyTorch module: rms = ||x||_2 * D^-0.5 ; y = w * x / (rms+eps)
    d = x.shape[-1]
    rms = jnp.sqrt(jnp.sum(x * x, axis=-1, keepdims=True)) * (d ** -0.5)
    return (w * x) * pl.reciprocal(rms + eps, approx=True)


# ---------------------------------------------------------------------------
# Kernel 1: h1 = x + o_proj(softmax(rope(q) rope(k)^T / sqrt(hd)) v)
#           with q,k,v = rmsnorm(x) @ W_qkv   (fused (D,3D) weight)
# ---------------------------------------------------------------------------
def _attn_block_kernel(x_ref, nw_ref, wqkv_ref, wo_ref, cos_ref, sins_ref,
                       o_ref, swq_ref, swk_ref, ctx_ref,
                       *, n_heads, head_dim, eps):
    x = x_ref[0]                                   # (S, D) f32
    seq, d_model = x.shape
    half = head_dim // 2
    scale = head_dim ** -0.5

    xn = _rmsnorm(x, nw_ref[...], eps)             # f32 (VPU/EUP)

    # Single fused QKV projection: bf16 operands, f32 accumulation on the MXU.
    qkv = jnp.dot(xn.astype(jnp.bfloat16), wqkv_ref[...],
                  preferred_element_type=jnp.float32)          # (S, 3D) f32
    q = qkv[:, :d_model]
    k = qkv[:, d_model:2 * d_model]
    v_bf = qkv[:, 2 * d_model:].astype(jnp.bfloat16)

    # Build rotate_half(q) / rotate_half(k) (without the sign) into lane-dense
    # (S, D) scratch via static half-width copies per head.  The sign of the
    # second-half term is folded into the host-built sin table.
    for h in range(n_heads):                       # static loop; small H.
        lo = h * head_dim                          # TODO(synk): lax.fori_loop
        swq_ref[:, lo:lo + half] = q[:, lo + half:lo + head_dim]   # for H >> 8
        swq_ref[:, lo + half:lo + head_dim] = q[:, lo:lo + half]
        swk_ref[:, lo:lo + half] = k[:, lo + half:lo + head_dim]
        swk_ref[:, lo + half:lo + head_dim] = k[:, lo:lo + half]

    cos = cos_ref[...]                             # (S, D): per head [ c |  c]
    sins = sins_ref[...]                           # (S, D): per head [-s | +s]
    # Full-width RoPE FMAs; fold the 1/sqrt(head_dim) scale into q.
    q_rope = ((q * cos + swq_ref[...] * sins) * scale).astype(jnp.bfloat16)
    k_rope = (k * cos + swk_ref[...] * sins).astype(jnp.bfloat16)

    # Causal mask (True == keep).  2-D iota as required on TPU.
    row = jax.lax.broadcasted_iota(jnp.int32, (seq, seq), 0)
    col = jax.lax.broadcasted_iota(jnp.int32, (seq, seq), 1)
    keep = col <= row

    dn = (((1,), (1,)), ((), ()))                  # contract last dims: A @ B.T
    for h in range(n_heads):
        lo = h * head_dim
        # Single K = head_dim contraction per head, bf16 operands, f32 acc.
        s_h = jax.lax.dot_general(q_rope[:, lo:lo + head_dim],
                                  k_rope[:, lo:lo + head_dim], dn,
                                  preferred_element_type=jnp.float32)
        s_h = jnp.where(keep, s_h, -jnp.inf)
        # Softmax in f32; normalisation via approx reciprocal (EUP).
        m = jnp.max(s_h, axis=-1, keepdims=True)
        e = jnp.exp(s_h - m)
        p = (e * pl.reciprocal(jnp.sum(e, axis=-1, keepdims=True), approx=True)
             ).astype(jnp.bfloat16)
        # Per-head PV into the (S, D) context scratch at a static column offset.
        ctx_ref[:, lo:lo + head_dim] = jnp.dot(
            p, v_bf[:, lo:lo + head_dim], preferred_element_type=jnp.float32)

    # One full-K o_proj matmul over the whole context (no per-head accumulate).
    attn = jnp.dot(ctx_ref[...].astype(jnp.bfloat16), wo_ref[...],
                   preferred_element_type=jnp.float32)
    # TODO(synk): optional attention_mask (padding-mask) branch of the PyTorch
    # module is not implemented; this kernel assumes attention_mask=None.
    o_ref[0] = x + attn                            # fused residual (f32)


# ---------------------------------------------------------------------------
# Kernel 2: out = h1 + fc2(gelu(fc1(rmsnorm(h1))))  on flattened (rows, D)
# ---------------------------------------------------------------------------
def _ffn_block_kernel(x_ref, nw_ref, w1_ref, b1_ref, w2_ref, b2_ref, o_ref,
                      *, eps):
    x = x_ref[...]                                 # (TR, D) f32
    xn = _rmsnorm(x, nw_ref[...], eps)
    h = jnp.dot(xn.astype(jnp.bfloat16), w1_ref[...],
                preferred_element_type=jnp.float32) + b1_ref[...]
    h = _gelu_exact(h)                             # f32 on the VPU/EUP
    y = jnp.dot(h.astype(jnp.bfloat16), w2_ref[...],
                preferred_element_type=jnp.float32) + b2_ref[...]
    o_ref[...] = x + y                             # fused residual (f32)


# ---------------------------------------------------------------------------
# Wrapper
# ---------------------------------------------------------------------------
def _nbytes(shape, dtype):
    n = 1
    for s in shape:
        n *= int(s)
    return n * jnp.dtype(dtype).itemsize


def _vmem_limit(block_bytes, scratch_bytes=0):
    # blocks are (implicitly) double-buffered by the pipeline; add margin and
    # clamp so the request is valid on every generation (v7x has 64 MiB/TC).
    est = 2 * block_bytes + scratch_bytes + (2 << 20)
    return int(min(max(est, 8 << 20), 48 << 20))


def _pick_row_tile(total, target=256):
    """Largest multiple-of-8 divisor of `total` <= target (>=2 grid steps if
    possible); falls back to the full extent (always a legal block)."""
    if total <= 8:
        return total
    cap = min(target, total)
    if total >= 16:
        cap = min(cap, total // 2)
    best = total
    for cand in range(8, cap + 1, 8):
        if total % cand == 0:
            best = cand
    return best


def decoder_block_forward(x, params, *, n_heads, eps=NORM_EPS, theta=ROPE_THETA):
    b, s_len, d_model = x.shape
    assert d_model % n_heads == 0, "dim must be divisible by n_heads"
    head_dim = d_model // n_heads
    assert head_dim % 2 == 0, "head_dim must be even for RoPE"
    hidden = params["w1T"].shape[1]

    # bf16 MXU operands (weights); fused (D, 3D) QKV weight.
    wqkv = jnp.concatenate(
        [params["wqT"], params["wkT"], params["wvT"]], axis=1
    ).astype(jnp.bfloat16)
    wo = params["woT"].astype(jnp.bfloat16)
    w1 = params["w1T"].astype(jnp.bfloat16)
    w2 = params["w2T"].astype(jnp.bfloat16)

    # Full-width RoPE tables: per head block = [cos|cos] and [-sin|+sin] (the
    # sign of rotate_half's first half is folded into the sin table).
    inv_freq = 1.0 / (theta ** (jnp.arange(0, head_dim, 2, dtype=jnp.float32)
                                / head_dim))
    freqs = jnp.outer(jnp.arange(s_len, dtype=jnp.float32), inv_freq)
    cos_h, sin_h = jnp.cos(freqs), jnp.sin(freqs)          # (S, head_dim/2)
    cos_full = jnp.tile(jnp.concatenate([cos_h, cos_h], axis=1), (1, n_heads))
    sin_signed = jnp.tile(jnp.concatenate([-sin_h, sin_h], axis=1), (1, n_heads))

    # ---------------- attention + residual ----------------
    attn_blocks = (_nbytes((1, s_len, d_model), jnp.float32) * 2     # x, out
                   + _nbytes((1, d_model), jnp.float32)
                   + _nbytes((d_model, 3 * d_model), jnp.bfloat16)
                   + _nbytes((d_model, d_model), jnp.bfloat16)
                   + _nbytes((s_len, d_model), jnp.float32) * 2)     # cos, sin
    attn_scratch = _nbytes((s_len, d_model), jnp.float32) * 3
    attn_kernel = functools.partial(_attn_block_kernel, n_heads=n_heads,
                                    head_dim=head_dim, eps=eps)
    h1 = pl.pallas_call(
        attn_kernel,
        out_shape=jax.ShapeDtypeStruct((b, s_len, d_model), jnp.float32),
        grid=(b,),
        in_specs=[
            pl.BlockSpec((1, s_len, d_model), lambda i: (i, 0, 0)),
            pl.BlockSpec((1, d_model), lambda i: (0, 0)),
            pl.BlockSpec((d_model, 3 * d_model), lambda i: (0, 0)),
            pl.BlockSpec((d_model, d_model), lambda i: (0, 0)),
            pl.BlockSpec((s_len, d_model), lambda i: (0, 0)),
            pl.BlockSpec((s_len, d_model), lambda i: (0, 0)),
        ],
        out_specs=pl.BlockSpec((1, s_len, d_model), lambda i: (i, 0, 0)),
        scratch_shapes=[
            pltpu.VMEM((s_len, d_model), jnp.float32),   # rotate_half(q)
            pltpu.VMEM((s_len, d_model), jnp.float32),   # rotate_half(k)
            pltpu.VMEM((s_len, d_model), jnp.float32),   # attention context
        ],
        compiler_params=pltpu.CompilerParams(
            dimension_semantics=("parallel",),
            vmem_limit_bytes=_vmem_limit(attn_blocks, attn_scratch)),
    )(x, params["norm1_w"], wqkv, wo, cos_full, sin_signed)

    # ---------------- feed-forward + residual (row-tiled) ----------------
    rows = b * s_len
    tr = _pick_row_tile(rows)
    ffn_blocks = (_nbytes((tr, d_model), jnp.float32) * 2            # x, out
                  + _nbytes((1, d_model), jnp.float32) * 2
                  + _nbytes((d_model, hidden), jnp.bfloat16)
                  + _nbytes((1, hidden), jnp.float32)
                  + _nbytes((hidden, d_model), jnp.bfloat16))
    ffn_kernel = functools.partial(_ffn_block_kernel, eps=eps)
    out_rows = pl.pallas_call(
        ffn_kernel,
        out_shape=jax.ShapeDtypeStruct((rows, d_model), jnp.float32),
        grid=(pl.cdiv(rows, tr),),
        in_specs=[
            pl.BlockSpec((tr, d_model), lambda i: (i, 0)),
            pl.BlockSpec((1, d_model), lambda i: (0, 0)),
            pl.BlockSpec((d_model, hidden), lambda i: (0, 0)),
            pl.BlockSpec((1, hidden), lambda i: (0, 0)),
            pl.BlockSpec((hidden, d_model), lambda i: (0, 0)),
            pl.BlockSpec((1, d_model), lambda i: (0, 0)),
        ],
        out_specs=pl.BlockSpec((tr, d_model), lambda i: (i, 0)),
        compiler_params=pltpu.CompilerParams(
            dimension_semantics=("parallel",),
            vmem_limit_bytes=_vmem_limit(ffn_blocks)),
    )(h1.reshape(rows, d_model), params["norm2_w"], w1, params["b1"],
      w2, params["b2"])
    return out_rows.reshape(b, s_len, d_model)


# ---------------------------------------------------------------------------
# Pure-JAX f32 reference (mirrors the PyTorch DecoderBlock, attention_mask=None)
# ---------------------------------------------------------------------------
def decoder_block_reference(x, params, *, n_heads, eps=NORM_EPS, theta=ROPE_THETA):
    b, s_len, d_model = x.shape
    hd = d_model // n_heads

    def rmsnorm(v, w):
        rms = jnp.sqrt(jnp.sum(v * v, axis=-1, keepdims=True)) * (d_model ** -0.5)
        return w * (v / (rms + eps))

    def rope(v):                                   # v: (B, H, S, hd)
        inv_freq = 1.0 / (theta ** (jnp.arange(0, hd, 2, dtype=jnp.float32) / hd))
        t = jnp.arange(s_len, dtype=jnp.float32)
        freqs = jnp.outer(t, inv_freq)
        emb = jnp.concatenate([freqs, freqs], axis=-1)
        cos = jnp.cos(emb)[None, None]
        sin = jnp.sin(emb)[None, None]
        v_rot = jnp.concatenate([-v[..., hd // 2:], v[..., :hd // 2]], axis=-1)
        return v * cos + v_rot * sin

    with jax.default_matmul_precision("highest"):  # scoped, not global
        n1 = rmsnorm(x, params["norm1_w"][0])
        q = (n1 @ params["wqT"]).reshape(b, s_len, n_heads, hd).transpose(0, 2, 1, 3)
        k = (n1 @ params["wkT"]).reshape(b, s_len, n_heads, hd).transpose(0, 2, 1, 3)
        v = (n1 @ params["wvT"]).reshape(b, s_len, n_heads, hd).transpose(0, 2, 1, 3)
        q, k = rope(q), rope(k)
        scores = jnp.einsum("bhqd,bhkd->bhqk", q, k) / math.sqrt(hd)
        mask = jnp.triu(jnp.ones((s_len, s_len), dtype=bool), k=1)
        scores = jnp.where(mask[None, None], -jnp.inf, scores)
        p = jax.nn.softmax(scores, axis=-1)
        attn = jnp.einsum("bhqk,bhkd->bhqd", p, v)
        attn = attn.transpose(0, 2, 1, 3).reshape(b, s_len, d_model) @ params["woT"]
        h1 = x + attn
        n2 = rmsnorm(h1, params["norm2_w"][0])
        ffn = jax.nn.gelu(n2 @ params["w1T"] + params["b1"][0], approximate=False)
        ffn = ffn @ params["w2T"] + params["b2"][0]
        return h1 + ffn


if __name__ == "__main__":
    # Scaled-down Pythia-style decoder block (dim multiple of 128 -> lane dense).
    B, S, D, H = 2, 16, 128, 4
    HIDDEN = 4 * D

    key = jax.random.PRNGKey(0)
    ks = jax.random.split(key, 12)
    x = jax.random.normal(ks[0], (B, S, D), dtype=jnp.float32)

    def init(k, shape, fan_in):
        return jax.random.normal(k, shape, dtype=jnp.float32) / math.sqrt(fan_in)

    params = {
        # nn.Linear weights stored pre-transposed as (in_features, out_features)
        "norm1_w": 1.0 + 0.1 * jax.random.normal(ks[1], (1, D), jnp.float32),
        "norm2_w": 1.0 + 0.1 * jax.random.normal(ks[2], (1, D), jnp.float32),
        "wqT": init(ks[3], (D, D), D),
        "wkT": init(ks[4], (D, D), D),
        "wvT": init(ks[5], (D, D), D),
        "woT": init(ks[6], (D, D), D),
        "w1T": init(ks[7], (D, HIDDEN), D),
        "b1": 0.02 * jax.random.normal(ks[8], (1, HIDDEN), jnp.float32),
        "w2T": init(ks[9], (HIDDEN, D), HIDDEN),
        "b2": 0.02 * jax.random.normal(ks[10], (1, D), jnp.float32),
    }

    out = decoder_block_forward(x, params, n_heads=H)
    jax.block_until_ready(out)
    assert out.shape == (B, S, D)

    ref = decoder_block_reference(x, params, n_heads=H)
    # Kernel uses bf16 MXU operands (f32 accumulation); compare against the
    # full-f32 reference with tolerances sized for bf16 operand rounding.
    max_err = float(jnp.max(jnp.abs(out - ref)))
    rel_err = float(jnp.linalg.norm(out - ref) / jnp.linalg.norm(ref))
    assert max_err < 1e-1 and rel_err < 2e-2, f"max={max_err} rel={rel_err}"

    print("KERNEL_OK")
</pallas_src>

<mosaic_0001>
module attributes {stable_mosaic.version = 11 : i64} {
  func.func @_attn_block_kernel(%arg0: i32, %arg1: memref<1x16x128xf32, #tpu.memory_space<vmem>>, %arg2: memref<1x128xf32, #tpu.memory_space<vmem>>, %arg3: memref<128x384xbf16, #tpu.memory_space<vmem>>, %arg4: memref<128x128xbf16, #tpu.memory_space<vmem>>, %arg5: memref<16x128xf32, #tpu.memory_space<vmem>>, %arg6: memref<16x128xf32, #tpu.memory_space<vmem>>, %arg7: memref<1x16x128xf32, #tpu.memory_space<vmem>>, %arg8: memref<16x128xf32, #tpu.memory_space<vmem>>, %arg9: memref<16x128xf32, #tpu.memory_space<vmem>>, %arg10: memref<16x128xf32, #tpu.memory_space<vmem>>) attributes {dimension_semantics = [#tpu.dimension_semantics<parallel>], iteration_bounds = array<i64: 2>, scalar_prefetch = 0 : i64, scratch_operands = 3 : i64, tpu.core_type = #tpu.core_type<tc>, window_params = [{transform_indices = @transform_0, window_bounds = array<i64: 1, 16, 128>}, {pipeline_mode = #tpu.pipeline_mode<synchronous>, transform_indices = @transform_1, window_bounds = array<i64: 1, 128>}, {pipeline_mode = #tpu.pipeline_mode<synchronous>, transform_indices = @transform_2, window_bounds = array<i64: 128, 384>}, {pipeline_mode = #tpu.pipeline_mode<synchronous>, transform_indices = @transform_3, window_bounds = array<i64: 128, 128>}, {pipeline_mode = #tpu.pipeline_mode<synchronous>, transform_indices = @transform_4, window_bounds = array<i64: 16, 128>}, {pipeline_mode = #tpu.pipeline_mode<synchronous>, transform_indices = @transform_5, window_bounds = array<i64: 16, 128>}, {transform_indices = @transform_6, window_bounds = array<i64: 1, 16, 128>}]} {
    %c0 = arith.constant 0 : index
    %c0_0 = arith.constant 0 : index
    %c0_1 = arith.constant 0 : index
    %0 = vector.load %arg1[%c0, %c0_0, %c0_1] : memref<1x16x128xf32, #tpu.memory_space<vmem>>, vector<1x16x128xf32>
    %1 = vector.shape_cast %0 : vector<1x16x128xf32> to vector<16x128xf32>
    %c0_2 = arith.constant 0 : index
    %c0_3 = arith.constant 0 : index
    %2 = vector.load %arg2[%c0_2, %c0_3] : memref<1x128xf32, #tpu.memory_space<vmem>>, vector<1x128xf32>
    %3 = arith.mulf %1, %1 : vector<16x128xf32>
    %cst = arith.constant dense<0.000000e+00> : vector<16xf32>
    %4 = vector.multi_reduction <add>, %3, %cst [1] : vector<16x128xf32> to vector<16xf32>
    %5 = vector.shape_cast %4 : vector<16xf32> to vector<16x1xf32>
    %6 = math.sqrt %5 : vector<16x1xf32>
    %cst_4 = arith.constant 0.0883883461 : f32
    %7 = vector.broadcast %cst_4 : f32 to vector<16x1xf32>
    %8 = arith.mulf %6, %7 : vector<16x1xf32>
    %9 = vector.broadcast %2 : vector<1x128xf32> to vector<16x128xf32>
    %10 = arith.mulf %9, %1 : vector<16x128xf32>
    %cst_5 = arith.constant 9.99999974E-6 : f32
    %11 = vector.broadcast %cst_5 : f32 to vector<16x1xf32>
    %12 = arith.addf %8, %11 : vector<16x1xf32>
    %13 = tpu.reciprocal %12 {approx = true} : vector<16x1xf32> -> vector<16x1xf32>
    %14 = vector.broadcast %13 : vector<16x1xf32> to vector<16x128xf32>
    %15 = arith.mulf %10, %14 : vector<16x128xf32>
    %16 = arith.truncf %15 : vector<16x128xf32> to vector<16x128xbf16>
    %c0_6 = arith.constant 0 : index
    %c0_7 = arith.constant 0 : index
    %17 = vector.load %arg3[%c0_6, %c0_7] : memref<128x384xbf16, #tpu.memory_space<vmem>>, vector<128x384xbf16>
    %cst_8 = arith.constant dense<0.000000e+00> : vector<16x384xf32>
    %18 = tpu.matmul %16, %17, %cst_8 {dimension_numbers = #tpu.dot_dimension_numbers<[1], [0], [0], [1], [0, 0, 1, 1], [], []>} : vector<16x128xbf16>, vector<128x384xbf16>, vector<16x384xf32> -> vector<16x384xf32>
    %19 = vector.extract_strided_slice %18 {offsets = [0, 0], sizes = [16, 128], strides = [1, 1]} : vector<16x384xf32> to vector<16x128xf32>
    %20 = vector.extract_strided_slice %18 {offsets = [0, 128], sizes = [16, 128], strides = [1, 1]} : vector<16x384xf32> to vector<16x128xf32>
    %21 = vector.extract_strided_slice %18 {offsets = [0, 256], sizes = [16, 128], strides = [1, 1]} : vector<16x384xf32> to vector<16x128xf32>
    %22 = arith.truncf %21 : vector<16x128xf32> to vector<16x128xbf16>
    %23 = vector.extract_strided_slice %19 {offsets = [0, 16], sizes = [16, 16], strides = [1, 1]} : vector<16x128xf32> to vector<16x16xf32>
    %c0_9 = arith.constant 0 : index
    %c0_10 = arith.constant 0 : index
    %24 = vector.load %arg8[%c0_9, %c0_10] : memref<16x128xf32, #tpu.memory_space<vmem>>, vector<16x16xf32>
    tpu.vector_store %arg8[%c0_9, %c0_10], %23 {strides = array<i32>} : memref<16x128xf32, #tpu.memory_space<vmem>>, vector<16x16xf32>,
    %25 = vector.extract_strided_slice %19 {offsets = [0, 0], sizes = [16, 16], strides = [1, 1]} : vector<16x128xf32> to vector<16x16xf32>
    %c0_11 = arith.constant 0 : index
    %c16 = arith.constant 16 : index
    %26 = vector.load %arg8[%c0_11, %c16] : memref<16x128xf32, #tpu.memory_space<vmem>>, vector<16x16xf32>
    tpu.vector_store %arg8[%c0_11, %c16], %25 {strides = array<i32>} : memref<16x128xf32, #tpu.memory_space<vmem>>, vector<16x16xf32>,
    %27 = vector.extract_strided_slice %20 {offsets = [0, 16], sizes = [16, 16], strides = [1, 1]} : vector<16x128xf32> to vector<16x16xf32>
    %c0_12 = arith.constant 0 : index
    %c0_13 = arith.constant 0 : index
    %28 = vector.load %arg9[%c0_12, %c0_13] : memref<16x128xf32, #tpu.memory_space<vmem>>, vector<16x16xf32>
    tpu.vector_store %arg9[%c0_12, %c0_13], %27 {strides = array<i32>} : memref<16x128xf32, #tpu.memory_space<vmem>>, vector<16x16xf32>,
    %29 = vector.extract_strided_slice %20 {offsets = [0, 0], sizes = [16, 16], strides = [1, 1]} : vector<16x128xf32> to vector<16x16xf32>
    %c0_14 = arith.constant 0 : index
    %c16_15 = arith.constant 16 : index
    %30 = vector.load %arg9[%c0_14, %c16_15] : memref<16x128xf32, #tpu.memory_space<vmem>>, vector<16x16xf32>
    tpu.vector_store %arg9[%c0_14, %c16_15], %29 {strides = array<i32>} : memref<16x128xf32, #tpu.memory_space<vmem>>, vector<16x16xf32>,
    %31 = vector.extract_strided_slice %19 {offsets = [0, 48], sizes = [16, 16], strides = [1, 1]} : vector<16x128xf32> to vector<16x16xf32>
    %c0_16 = arith.constant 0 : index
    %c32 = arith.constant 32 : index
    %32 = vector.load %arg8[%c0_16, %c32] : memref<16x128xf32, #tpu.memory_space<vmem>>, vector<16x16xf32>
    tpu.vector_store %arg8[%c0_16, %c32], %31 {strides = array<i32>} : memref<16x128xf32, #tpu.memory_space<vmem>>, vector<16x16xf32>,
    %33 = vector.extract_strided_slice %19 {offsets = [0, 32], sizes = [16, 16], strides = [1, 1]} : vector<16x128xf32> to vector<16x16xf32>
    %c0_17 = arith.constant 0 : index
    %c48 = arith.constant 48 : index
    %34 = vector.load %arg8[%c0_17, %c48] : memref<16x128xf32, #tpu.memory_space<vmem>>, vector<16x16xf32>
    tpu.vector_store %arg8[%c0_17, %c48], %33 {strides = array<i32>} : memref<16x128xf32, #tpu.memory_space<vmem>>, vector<16x16xf32>,
    %35 = vector.extract_strided_slice %20 {offsets = [0, 48], sizes = [16, 16], strides = [1, 1]} : vector<16x128xf32> to vector<16x16xf32>
    %c0_18 = arith.constant 0 : index
    %c32_19 = arith.constant 32 : index
    %36 = vector.load %arg9[%c0_18, %c32_19] : memref<16x128xf32, #tpu.memory_space<vmem>>, vector<16x16xf32>
    tpu.vector_store %arg9[%c0_18, %c32_19], %35 {strides = array<i32>} : memref<16x128xf32, #tpu.memory_space<vmem>>, vector<16x16xf32>,
    %37 = vector.extract_strided_slice %20 {offsets = [0, 32], sizes = [16, 16], strides = [1, 1]} : vector<16x128xf32> to vector<16x16xf32>
    %c0_20 = arith.constant 0 : index
    %c48_21 = arith.constant 48 : index
    %38 = vector.load %arg9[%c0_20, %c48_21] : memref<16x128xf32, #tpu.memory_space<vmem>>, vector<16x16xf32>
    tpu.vector_store %arg9[%c0_20, %c48_21], %37 {strides = array<i32>} : memref<16x128xf32, #tpu.memory_space<vmem>>, vector<16x16xf32>,
    %39 = vector.extract_strided_slice %19 {offsets = [0, 80], sizes = [16, 16], strides = [1, 1]} : vector<16x128xf32> to vector<16x16xf32>
    %c0_22 = arith.constant 0 : index
    %c64 = arith.constant 64 : index
    %40 = vector.load %arg8[%c0_22, %c64] : memref<16x128xf32, #tpu.memory_space<vmem>>, vector<16x16xf32>
    tpu.vector_store %arg8[%c0_22, %c64], %39 {strides = array<i32>} : memref<16x128xf32, #tpu.memory_space<vmem>>, vector<16x16xf32>,
    %41 = vector.extract_strided_slice %19 {offsets = [0, 64], sizes = [16, 16], strides = [1, 1]} : vector<16x128xf32> to vector<16x16xf32>
    %c0_23 = arith.constant 0 : index
    %c80 = arith.constant 80 : index
    %42 = vector.load %arg8[%c0_23, %c80] : memref<16x128xf32, #tpu.memory_space<vmem>>, vector<16x16xf32>
    tpu.vector_store %arg8[%c0_23, %c80], %41 {strides = array<i32>} : memref<16x128xf32, #tpu.memory_space<vmem>>, vector<16x16xf32>,
    %43 = vector.extract_strided_slice %20 {offsets = [0, 80], sizes = [16, 16], strides = [1, 1]} : vector<16x128xf32> to vector<16x16xf32>
    %c0_24 = arith.constant 0 : index
    %c64_25 = arith.constant 64 : index
    %44 = vector.load %arg9[%c0_24, %c64_25] : memref<16x128xf32, #tpu.memory_space<vmem>>, vector<16x16xf32>
    tpu.vector_store %arg9[%c0_24, %c64_25], %43 {strides = array<i32>} : memref<16x128xf32, #tpu.memory_space<vmem>>, vector<16x16xf32>,
    %45 = vector.extract_strided_slice %20 {offsets = [0, 64], sizes = [16, 16], strides = [1, 1]} : vector<16x128xf32> to vector<16x16xf32>
    %c0_26 = arith.constant 0 : index
    %c80_27 = arith.constant 80 : index
    %46 = vector.load %arg9[%c0_26, %c80_27] : memref<16x128xf32, #tpu.memory_space<vmem>>, vector<16x16xf32>
    tpu.vector_store %arg9[%c0_26, %c80_27], %45 {strides = array<i32>} : memref<16x128xf32, #tpu.memory_space<vmem>>, vector<16x16xf32>,
    %47 = vector.extract_strided_slice %19 {offsets = [0, 112], sizes = [16, 16], strides = [1, 1]} : vector<16x128xf32> to vector<16x16xf32>
    %c0_28 = arith.constant 0 : index
    %c96 = arith.constant 96 : index
    %48 = vector.load %arg8[%c0_28, %c96] : memref<16x128xf32, #tpu.memory_space<vmem>>, vector<16x16xf32>
    tpu.vector_store %arg8[%c0_28, %c96], %47 {strides = array<i32>} : memref<16x128xf32, #tpu.memory_space<vmem>>, vector<16x16xf32>,
    %49 = vector.extract_strided_slice %19 {offsets = [0, 96], sizes = [16, 16], strides = [1, 1]} : vector<16x128xf32> to vector<16x16xf32>
    %c0_29 = arith.constant 0 : index
    %c112 = arith.constant 112 : index
    %50 = vector.load %arg8[%c0_29, %c112] : memref<16x128xf32, #tpu.memory_space<vmem>>, vector<16x16xf32>
    tpu.vector_store %arg8[%c0_29, %c112], %49 {strides = array<i32>} : memref<16x128xf32, #tpu.memory_space<vmem>>, vector<16x16xf32>,
    %51 = vector.extract_strided_slice %20 {offsets = [0, 112], sizes = [16, 16], strides = [1, 1]} : vector<16x128xf32> to vector<16x16xf32>
    %c0_30 = arith.constant 0 : index
    %c96_31 = arith.constant 96 : index
    %52 = vector.load %arg9[%c0_30, %c96_31] : memref<16x128xf32, #tpu.memory_space<vmem>>, vector<16x16xf32>
    tpu.vector_store %arg9[%c0_30, %c96_31], %51 {strides = array<i32>} : memref<16x128xf32, #tpu.memory_space<vmem>>, vector<16x16xf32>,
    %53 = vector.extract_strided_slice %20 {offsets = [0, 96], sizes = [16, 16], strides = [1, 1]} : vector<16x128xf32> to vector<16x16xf32>
    %c0_32 = arith.constant 0 : index
    %c112_33 = arith.constant 112 : index
    %54 = vector.load %arg9[%c0_32, %c112_33] : memref<16x128xf32, #tpu.memory_space<vmem>>, vector<16x16xf32>
    tpu.vector_store %arg9[%c0_32, %c112_33], %53 {strides = array<i32>} : memref<16x128xf32, #tpu.memory_space<vmem>>, vector<16x16xf32>,
    %c0_34 = arith.constant 0 : index
    %c0_35 = arith.constant 0 : index
    %55 = vector.load %arg5[%c0_34, %c0_35] : memref<16x128xf32, #tpu.memory_space<vmem>>, vector<16x128xf32>
    %c0_36 = arith.constant 0 : index
    %c0_37 = arith.constant 0 : index
    %56 = vector.load %arg6[%c0_36, %c0_37] : memref<16x128xf32, #tpu.memory_space<vmem>>, vector<16x128xf32>
    %57 = arith.mulf %19, %55 : vector<16x128xf32>
    %c0_38 = arith.constant 0 : index
    %c0_39 = arith.constant 0 : index
    %58 = vector.load %arg8[%c0_38, %c0_39] : memref<16x128xf32, #tpu.memory_space<vmem>>, vector<16x128xf32>
    %59 = arith.mulf %58, %56 : vector<16x128xf32>
    %60 = arith.addf %57, %59 : vector<16x128xf32>
    %cst_40 = arith.constant 0.176776692 : f32
    %61 = vector.broadcast %cst_40 : f32 to vector<16x128xf32>
    %62 = arith.mulf %60, %61 : vector<16x128xf32>
    %63 = arith.truncf %62 : vector<16x128xf32> to vector<16x128xbf16>
    %64 = arith.mulf %20, %55 : vector<16x128xf32>
    %c0_41 = arith.constant 0 : index
    %c0_42 = arith.constant 0 : index
    %65 = vector.load %arg9[%c0_41, %c0_42] : memref<16x128xf32, #tpu.memory_space<vmem>>, vector<16x128xf32>
    %66 = arith.mulf %65, %56 : vector<16x128xf32>
    %67 = arith.addf %64, %66 : vector<16x128xf32>
    %68 = arith.truncf %67 : vector<16x128xf32> to vector<16x128xbf16>
    %69 = tpu.iota {dimensions = array<i32: 0>} : vector<16x16xi32>
    %70 = tpu.iota {dimensions = array<i32: 1>} : vector<16x16xi32>
    %71 = arith.cmpi sle, %70, %69 : vector<16x16xi32>
    %72 = vector.extract_strided_slice %63 {offsets = [0, 0], sizes = [16, 32], strides = [1, 1]} : vector<16x128xbf16> to vector<16x32xbf16>
    %73 = vector.extract_strided_slice %68 {offsets = [0, 0], sizes = [16, 32], strides = [1, 1]} : vector<16x128xbf16> to vector<16x32xbf16>
    %cst_43 = arith.constant dense<0.000000e+00> : vector<16x16xf32>
    %74 = tpu.matmul %72, %73, %cst_43 {dimension_numbers = #tpu.dot_dimension_numbers<[1], [1], [0], [0], [0, 0, 1, 0], [], []>} : vector<16x32xbf16>, vector<16x32xbf16>, vector<16x16xf32> -> vector<16x16xf32>
    %cst_44 = arith.constant 0xFF800000 : f32
    %75 = vector.broadcast %cst_44 : f32 to vector<16x16xf32>
    %76 = arith.select %71, %74, %75 : vector<16x16xi1>, vector<16x16xf32>
    %cst_45 = arith.constant dense<0xFF800000> : vector<16xf32>
    %77 = vector.multi_reduction <maximumf>, %76, %cst_45 [1] : vector<16x16xf32> to vector<16xf32>
    %78 = vector.shape_cast %77 : vector<16xf32> to vector<16x1xf32>
    %79 = vector.broadcast %78 : vector<16x1xf32> to vector<16x16xf32>
    %80 = arith.subf %76, %79 : vector<16x16xf32>
    %81 = math.exp %80 : vector<16x16xf32>
    %cst_46 = arith.constant dense<0.000000e+00> : vector<16xf32>
    %82 = vector.multi_reduction <add>, %81, %cst_46 [1] : vector<16x16xf32> to vector<16xf32>
    %83 = vector.shape_cast %82 : vector<16xf32> to vector<16x1xf32>
    %84 = tpu.reciprocal %83 {approx = true} : vector<16x1xf32> -> vector<16x1xf32>
    %85 = vector.broadcast %84 : vector<16x1xf32> to vector<16x16xf32>
    %86 = arith.mulf %81, %85 : vector<16x16xf32>
    %87 = arith.truncf %86 : vector<16x16xf32> to vector<16x16xbf16>
    %88 = vector.extract_strided_slice %22 {offsets = [0, 0], sizes = [16, 32], strides = [1, 1]} : vector<16x128xbf16> to vector<16x32xbf16>
    %cst_47 = arith.constant dense<0.000000e+00> : vector<16x32xf32>
    %89 = tpu.matmul %87, %88, %cst_47 {dimension_numbers = #tpu.dot_dimension_numbers<[1], [0], [0], [1], [0, 0, 1, 1], [], []>} : vector<16x16xbf16>, vector<16x32xbf16>, vector<16x32xf32> -> vector<16x32xf32>
    %c0_48 = arith.constant 0 : index
    %c0_49 = arith.constant 0 : index
    %90 = vector.load %arg10[%c0_48, %c0_49] : memref<16x128xf32, #tpu.memory_space<vmem>>, vector<16x32xf32>
    tpu.vector_store %arg10[%c0_48, %c0_49], %89 {strides = array<i32>} : memref<16x128xf32, #tpu.memory_space<vmem>>, vector<16x32xf32>,
    %91 = vector.extract_strided_slice %63 {offsets = [0, 32], sizes = [16, 32], strides = [1, 1]} : vector<16x128xbf16> to vector<16x32xbf16>
    %92 = vector.extract_strided_slice %68 {offsets = [0, 32], sizes = [16, 32], strides = [1, 1]} : vector<16x128xbf16> to vector<16x32xbf16>
    %cst_50 = arith.constant dense<0.000000e+00> : vector<16x16xf32>
    %93 = tpu.matmul %91, %92, %cst_50 {dimension_numbers = #tpu.dot_dimension_numbers<[1], [1], [0], [0], [0, 0, 1, 0], [], []>} : vector<16x32xbf16>, vector<16x32xbf16>, vector<16x16xf32> -> vector<16x16xf32>
    %cst_51 = arith.constant 0xFF800000 : f32
    %94 = vector.broadcast %cst_51 : f32 to vector<16x16xf32>
    %95 = arith.select %71, %93, %94 : vector<16x16xi1>, vector<16x16xf32>
    %cst_52 = arith.constant dense<0xFF800000> : vector<16xf32>
    %96 = vector.multi_reduction <maximumf>, %95, %cst_52 [1] : vector<16x16xf32> to vector<16xf32>
    %97 = vector.shape_cast %96 : vector<16xf32> to vector<16x1xf32>
    %98 = vector.broadcast %97 : vector<16x1xf32> to vector<16x16xf32>
    %99 = arith.subf %95, %98 : vector<16x16xf32>
    %100 = math.exp %99 : vector<16x16xf32>
    %cst_53 = arith.constant dense<0.000000e+00> : vector<16xf32>
    %101 = vector.multi_reduction <add>, %100, %cst_53 [1] : vector<16x16xf32> to vector<16xf32>
    %102 = vector.shape_cast %101 : vector<16xf32> to vector<16x1xf32>
    %103 = tpu.reciprocal %102 {approx = true} : vector<16x1xf32> -> vector<16x1xf32>
    %104 = vector.broadcast %103 : vector<16x1xf32> to vector<16x16xf32>
    %105 = arith.mulf %100, %104 : vector<16x16xf32>
    %106 = arith.truncf %105 : vector<16x16xf32> to vector<16x16xbf16>
    %107 = vector.extract_strided_slice %22 {offsets = [0, 32], sizes = [16, 32], strides = [1, 1]} : vector<16x128xbf16> to vector<16x32xbf16>
    %cst_54 = arith.constant dense<0.000000e+00> : vector<16x32xf32>
    %108 = tpu.matmul %106, %107, %cst_54 {dimension_numbers = #tpu.dot_dimension_numbers<[1], [0], [0], [1], [0, 0, 1, 1], [], []>} : vector<16x16xbf16>, vector<16x32xbf16>, vector<16x32xf32> -> vector<16x32xf32>
    %c0_55 = arith.constant 0 : index
    %c32_56 = arith.constant 32 : index
    %109 = vector.load %arg10[%c0_55, %c32_56] : memref<16x128xf32, #tpu.memory_space<vmem>>, vector<16x32xf32>
    tpu.vector_store %arg10[%c0_55, %c32_56], %108 {strides = array<i32>} : memref<16x128xf32, #tpu.memory_space<vmem>>, vector<16x32xf32>,
    %110 = vector.extract_strided_slice %63 {offsets = [0, 64], sizes = [16, 32], strides = [1, 1]} : vector<16x128xbf16> to vector<16x32xbf16>
    %111 = vector.extract_strided_slice %68 {offsets = [0, 64], sizes = [16, 32], strides = [1, 1]} : vector<16x128xbf16> to vector<16x32xbf16>
    %cst_57 = arith.constant dense<0.000000e+00> : vector<16x16xf32>
    %112 = tpu.matmul %110, %111, %cst_57 {dimension_numbers = #tpu.dot_dimension_numbers<[1], [1], [0], [0], [0, 0, 1, 0], [], []>} : vector<16x32xbf16>, vector<16x32xbf16>, vector<16x16xf32> -> vector<16x16xf32>
    %cst_58 = arith.constant 0xFF800000 : f32
    %113 = vector.broadcast %cst_58 : f32 to vector<16x16xf32>
    %114 = arith.select %71, %112, %113 : vector<16x16xi1>, vector<16x16xf32>
    %cst_59 = arith.constant dense<0xFF800000> : vector<16xf32>
    %115 = vector.multi_reduction <maximumf>, %114, %cst_59 [1] : vector<16x16xf32> to vector<16xf32>
    %116 = vector.shape_cast %115 : vector<16xf32> to vector<16x1xf32>
    %117 = vector.broadcast %116 : vector<16x1xf32> to vector<16x16xf32>
    %118 = arith.subf %114, %117 : vector<16x16xf32>
    %119 = math.exp %118 : vector<16x16xf32>
    %cst_60 = arith.constant dense<0.000000e+00> : vector<16xf32>
    %120 = vector.multi_reduction <add>, %119, %cst_60 [1] : vector<16x16xf32> to vector<16xf32>
    %121 = vector.shape_cast %120 : vector<16xf32> to vector<16x1xf32>
    %122 = tpu.reciprocal %121 {approx = true} : vector<16x1xf32> -> vector<16x1xf32>
    %123 = vector.broadcast %122 : vector<16x1xf32> to vector<16x16xf32>
    %124 = arith.mulf %119, %123 : vector<16x16xf32>
    %125 = arith.truncf %124 : vector<16x16xf32> to vector<16x16xbf16>
    %126 = vector.extract_strided_slice %22 {offsets = [0, 64], sizes = [16, 32], strides = [1, 1]} : vector<16x128xbf16> to vector<16x32xbf16>
    %cst_61 = arith.constant dense<0.000000e+00> : vector<16x32xf32>
    %127 = tpu.matmul %125, %126, %cst_61 {dimension_numbers = #tpu.dot_dimension_numbers<[1], [0], [0], [1], [0, 0, 1, 1], [], []>} : vector<16x16xbf16>, vector<16x32xbf16>, vector<16x32xf32> -> vector<16x32xf32>
    %c0_62 = arith.constant 0 : index
    %c64_63 = arith.constant 64 : index
    %128 = vector.load %arg10[%c0_62, %c64_63] : memref<16x128xf32, #tpu.memory_space<vmem>>, vector<16x32xf32>
    tpu.vector_store %arg10[%c0_62, %c64_63], %127 {strides = array<i32>} : memref<16x128xf32, #tpu.memory_space<vmem>>, vector<16x32xf32>,
    %129 = vector.extract_strided_slice %63 {offsets = [0, 96], sizes = [16, 32], strides = [1, 1]} : vector<16x128xbf16> to vector<16x32xbf16>
    %130 = vector.extract_strided_slice %68 {offsets = [0, 96], sizes = [16, 32], strides = [1, 1]} : vector<16x128xbf16> to vector<16x32xbf16>
    %cst_64 = arith.constant dense<0.000000e+00> : vector<16x16xf32>
    %131 = tpu.matmul %129, %130, %cst_64 {dimension_numbers = #tpu.dot_dimension_numbers<[1], [1], [0], [0], [0, 0, 1, 0], [], []>} : vector<16x32xbf16>, vector<16x32xbf16>, vector<16x16xf32> -> vector<16x16xf32>
    %cst_65 = arith.constant 0xFF800000 : f32
    %132 = vector.broadcast %cst_65 : f32 to vector<16x16xf32>
    %133 = arith.select %71, %131, %132 : vector<16x16xi1>, vector<16x16xf32>
    %cst_66 = arith.constant dense<0xFF800000> : vector<16xf32>
    %134 = vector.multi_reduction <maximumf>, %133, %cst_66 [1] : vector<16x16xf32> to vector<16xf32>
    %135 = vector.shape_cast %134 : vector<16xf32> to vector<16x1xf32>
    %136 = vector.broadcast %135 : vector<16x1xf32> to vector<16x16xf32>
    %137 = arith.subf %133, %136 : vector<16x16xf32>
    %138 = math.exp %137 : vector<16x16xf32>
    %cst_67 = arith.constant dense<0.000000e+00> : vector<16xf32>
    %139 = vector.multi_reduction <add>, %138, %cst_67 [1] : vector<16x16xf32> to vector<16xf32>
    %140 = vector.shape_cast %139 : vector<16xf32> to vector<16x1xf32>
    %141 = tpu.reciprocal %140 {approx = true} : vector<16x1xf32> -> vector<16x1xf32>
    %142 = vector.broadcast %141 : vector<16x1xf32> to vector<16x16xf32>
    %143 = arith.mulf %138, %142 : vector<16x16xf32>
    %144 = arith.truncf %143 : vector<16x16xf32> to vector<16x16xbf16>
    %145 = vector.extract_strided_slice %22 {offsets = [0, 96], sizes = [16, 32], strides = [1, 1]} : vector<16x128xbf16> to vector<16x32xbf16>
    %cst_68 = arith.constant dense<0.000000e+00> : vector<16x32xf32>
    %146 = tpu.matmul %144, %145, %cst_68 {dimension_numbers = #tpu.dot_dimension_numbers<[1], [0], [0], [1], [0, 0, 1, 1], [], []>} : vector<16x16xbf16>, vector<16x32xbf16>, vector<16x32xf32> -> vector<16x32xf32>
    %c0_69 = arith.constant 0 : index
    %c96_70 = arith.constant 96 : index
    %147 = vector.load %arg10[%c0_69, %c96_70] : memref<16x128xf32, #tpu.memory_space<vmem>>, vector<16x32xf32>
    tpu.vector_store %arg10[%c0_69, %c96_70], %146 {strides = array<i32>} : memref<16x128xf32, #tpu.memory_space<vmem>>, vector<16x32xf32>,
    %c0_71 = arith.constant 0 : index
    %c0_72 = arith.constant 0 : index
    %148 = vector.load %arg10[%c0_71, %c0_72] : memref<16x128xf32, #tpu.memory_space<vmem>>, vector<16x128xf32>
    %149 = arith.truncf %148 : vector<16x128xf32> to vector<16x128xbf16>
    %c0_73 = arith.constant 0 : index
    %c0_74 = arith.constant 0 : index
    %150 = vector.load %arg4[%c0_73, %c0_74] : memref<128x128xbf16, #tpu.memory_space<vmem>>, vector<128x128xbf16>
    %cst_75 = arith.constant dense<0.000000e+00> : vector<16x128xf32>
    %151 = tpu.matmul %149, %150, %cst_75 {dimension_numbers = #tpu.dot_dimension_numbers<[1], [0], [0], [1], [0, 0, 1, 1], [], []>} : vector<16x128xbf16>, vector<128x128xbf16>, vector<16x128xf32> -> vector<16x128xf32>
    %152 = arith.addf %1, %151 : vector<16x128xf32>
    %c0_76 = arith.constant 0 : index
    %c0_77 = arith.constant 0 : index
    %c0_78 = arith.constant 0 : index
    %153 = vector.load %arg7[%c0_76, %c0_77, %c0_78] : memref<1x16x128xf32, #tpu.memory_space<vmem>>, vector<1x16x128xf32>
    %154 = vector.shape_cast %153 : vector<1x16x128xf32> to vector<16x128xf32>
    %155 = vector.shape_cast %152 : vector<16x128xf32> to vector<1x16x128xf32>
    tpu.vector_store %arg7[%c0_76, %c0_77, %c0_78], %155 {strides = array<i32>} : memref<1x16x128xf32, #tpu.memory_space<vmem>>, vector<1x16x128xf32>,
    return
  }
  func.func @transform_0(%arg0: i32) -> (i32, i32, i32) {
    %c0_i32 = arith.constant 0 : i32
    %c0_i32_0 = arith.constant 0 : i32
    %c0_i32_1 = arith.constant 0 : i32
    return %arg0, %c0_i32, %c0_i32_0 : i32, i32, i32
  }
  func.func @transform_1(%arg0: i32) -> (i32, i32) {
    %c0_i32 = arith.constant 0 : i32
    %c0_i32_0 = arith.constant 0 : i32
    %c0_i32_1 = arith.constant 0 : i32
    return %c0_i32, %c0_i32_0 : i32, i32
  }
  func.func @transform_2(%arg0: i32) -> (i32, i32) {
    %c0_i32 = arith.constant 0 : i32
    %c0_i32_0 = arith.constant 0 : i32
    %c0_i32_1 = arith.constant 0 : i32
    return %c0_i32, %c0_i32_0 : i32, i32
  }
  func.func @transform_3(%arg0: i32) -> (i32, i32) {
    %c0_i32 = arith.constant 0 : i32
    %c0_i32_0 = arith.constant 0 : i32
    %c0_i32_1 = arith.constant 0 : i32
    return %c0_i32, %c0_i32_0 : i32, i32
  }
  func.func @transform_4(%arg0: i32) -> (i32, i32) {
    %c0_i32 = arith.constant 0 : i32
    %c0_i32_0 = arith.constant 0 : i32
    %c0_i32_1 = arith.constant 0 : i32
    return %c0_i32, %c0_i32_0 : i32, i32
  }
  func.func @transform_5(%arg0: i32) -> (i32, i32) {
    %c0_i32 = arith.constant 0 : i32
    %c0_i32_0 = arith.constant 0 : i32
    %c0_i32_1 = arith.constant 0 : i32
    return %c0_i32, %c0_i32_0 : i32, i32
  }
  func.func @transform_6(%arg0: i32) -> (i32, i32, i32) {
    %c0_i32 = arith.constant 0 : i32
    %c0_i32_0 = arith.constant 0 : i32
    %c0_i32_1 = arith.constant 0 : i32
    return %arg0, %c0_i32, %c0_i32_0 : i32, i32, i32
  }
}

</mosaic_0001>

<llo_original>
// kernel: tpu_custom_call.1
$region0: #{tpu_custom_call.1}
  #allocation0 [shape = 'u32[]', space=smem, size = 0x4, offset = 0x4, fixed_abs, tag = 'smem constant byte address 0x4 - core index']
  #allocation1 [shape = 'u32[72,128]{1,0:T(1,128)}', space=vmem, size = 0x9000, scoped, tag = 'internal scratch']
  #allocation2 [shape = 'f32[16,128]{1,0:T(8,128)}', space=vmem, size = 0x2000, scoped, tag = 'scratch operand']
  #allocation3 [shape = 'f32[16,128]{1,0:T(8,128)}', space=vmem, size = 0x2000, scoped, tag = 'scratch operand']
  #allocation4 [shape = 'f32[16,128]{1,0:T(8,128)}', space=vmem, size = 0x2000, scoped, tag = 'scratch operand']
  %s0 = inlined_call_operand.hbm [shape: f32[2,16,128], index: 0, kind: input, shape index: {}]
  %s1 = inlined_call_operand.hbm [shape: f32[1,128], index: 1, kind: input, shape index: {}]
  %s2 = inlined_call_operand.hbm [shape: bf16[128,384], index: 2, kind: input, shape index: {}]
  %s3 = inlined_call_operand.hbm [shape: bf16[128,128], index: 3, kind: input, shape index: {}]
  %s4 = inlined_call_operand.hbm [shape: f32[16,128], index: 4, kind: input, shape index: {}]
  %s5 = inlined_call_operand.hbm [shape: f32[16,128], index: 5, kind: input, shape index: {}]
  %s6 = inlined_call_operand.hbm [shape: f32[2,16,128], index: 6, kind: output, shape index: {}]
  %s7 = sld [smem:[#allocation0]]
  $region81: #{tpu_custom_call.1} parent=0
    _
  %s9 = ssub.s32 1, %s7
  %s10 = scalar_select 0, %s9, %s7
  $region1: #{tpu_custom_call.1} parent=0
    #allocation5 [shape = 'u8[16384]{0}', space=vmem, size = 0x4000, scoped, tag = 'input window, operand 0']
    #allocation6 [shape = 's32[2]{0}', space=sflag, size = 0x8, scoped, tag = 'scoped memory for tpu_custom_call.1']
    #allocation7 [shape = 's32[2]{0}', space=sflag, size = 0x8, scoped, tag = 'scoped memory for tpu_custom_call.1']
    #allocation8 [shape = 'u8[512]{0}', space=vmem, size = 0x400, scoped, tag = 'input window, operand 1, single buffered']
    #allocation9 [shape = 's32[1]{0}', space=sflag, size = 0x4, scoped, tag = 'scoped memory for tpu_custom_call.1']
    #allocation10 [shape = 'u8[98304]{0}', space=vmem, size = 0x18000, scoped, tag = 'input window, operand 2, single buffered']
    #allocation11 [shape = 'u8[32768]{0}', space=vmem, size = 0x8000, scoped, tag = 'input window, operand 3, single buffered']
    #allocation12 [shape = 's32[1]{0}', space=sflag, size = 0x4, scoped, tag = 'scoped memory for tpu_custom_call.1']
    #allocation13 [shape = 'u8[8192]{0}', space=vmem, size = 0x2000, scoped, tag = 'input window, operand 4, single buffered']
    #allocation14 [shape = 'u8[8192]{0}', space=vmem, size = 0x2000, scoped, tag = 'input window, operand 5, single buffered']
    #allocation15 [shape = 's32[1]{0}', space=sflag, size = 0x4, scoped, tag = 'scoped memory for tpu_custom_call.1']
    #allocation16 [shape = 'u8[16384]{0}', space=vmem, size = 0x4000, scoped, tag = 'output window, operand 0']
    %11 = vsyncpa [#allocation6], 0
    %s12 = scalar_lea.sflag [#allocation6], 1
    %13 = vsyncpa %s12, 0
    %14 = vsyncpa [#allocation9], 0
    %15 = vsyncpa [#allocation12], 0
    %16 = vsyncpa [#allocation15], 0
    %17 = vsyncpa [#allocation7], 0
    %s18 = scalar_lea.sflag [#allocation7], 1
    %19 = vsyncpa %s18, 0
    loop: start=0, step=1, limit=4
    $region2: #{tpu_custom_call.1} parent=1 // loop_pre_header
      _
    $region3: #{tpu_custom_call.1} parent=1 // loop_header
      %s21 = sphi 0, %s25
      %p22 = scmp.ge.s32.totalorder %s21, 4
      %s31 = sphi 0, %s33
      %s34 = sphi 0, %s31
      %s35 = sphi 0, %s34
      %s51 = sphi 0, %s35
      %s55 = sphi 0, %s55
      %s57 = sphi 0, %s55
      %s58 = sphi 0, %s57
      %s72 = sphi 0, %s58
      %s76 = sphi 0, %s76
      %s78 = sphi 0, %s76
      %s79 = sphi 0, %s78
      %s93 = sphi 0, %s79
      %s97 = sphi 0, %s97
      %s99 = sphi 0, %s97
      %s100 = sphi 0, %s99
      %s114 = sphi 0, %s100
      %s118 = sphi 0, %s118
      %s120 = sphi 0, %s118
      %s121 = sphi 0, %s120
      %s135 = sphi 0, %s121
      %s139 = sphi 0, %s139
      %s141 = sphi 0, %s139
      %s142 = sphi 0, %s141
      %s156 = sphi 0, %s142
      %s162 = sphi 0, %s164
      %s165 = sphi 0, %s162
      %s166 = sphi 0, %s165
      %s182 = sphi 0, %s166
    $region4: #{tpu_custom_call.1} parent=1 // loop_header_branch
      %24 = sbr.rel (%p22) target = $region8
    $region5: #{tpu_custom_call.1} parent=1 // loop_body
      %s26 = ssub.s32 %s21, 1
      %s27 = ssub.s32 %s21, 2
      %s28 = sadd.s32 %s21, 1
      %s29 = ssub.s32 %s21, %s28
      %p30 = scmp.eq.s32.totalorder %s29, 0
      %s32 = sadd.s32 %s31, 1
      %s33 = scalar_select %p30, %s31, %s32
      %p36 = pneg %p30
      %p37 = scmp.eq.s32.totalorder %s21, 1
      %p38 = por %p36, %p37
      %p39 = scmp.ne.s32.totalorder %s31, %s34
      %p40 = scmp.eq.s32.totalorder %s21, 0
      %p41 = por %p39, %p40
      %p42 = scmp.ne.s32.totalorder %s31, %s34
      %p43 = scmp.eq.s32.totalorder %s26, 1
      %p44 = por %p42, %p43
      %p45 = scmp.ne.s32.totalorder %s34, %s35
      %p46 = scmp.eq.s32.totalorder %s26, 0
      %p47 = por %p45, %p46
      %p48 = scmp.ne.s32.totalorder %s34, %s35
      %p49 = scmp.eq.s32.totalorder %s27, 1
      %p50 = por %p48, %p49
      %p52 = scmp.ne.s32.totalorder %s35, %s51
      %p53 = scmp.eq.s32.totalorder %s27, 0
      %p54 = por %p52, %p53
      %s56 = sadd.s32 %s55, 1
      %p59 = scmp.eq.s32.totalorder %s21, 1
      %p60 = scmp.ne.s32.totalorder %s55, %s57
      %p61 = scmp.eq.s32.totalorder %s21, 0
      %p62 = por %p60, %p61
      %p63 = scmp.ne.s32.totalorder %s55, %s57
      %p64 = scmp.eq.s32.totalorder %s26, 1
      %p65 = por %p63, %p64
      %p66 = scmp.ne.s32.totalorder %s57, %s58
      %p67 = scmp.eq.s32.totalorder %s26, 0
      %p68 = por %p66, %p67
      %p69 = scmp.ne.s32.totalorder %s57, %s58
      %p70 = scmp.eq.s32.totalorder %s27, 1
      %p71 = por %p69, %p70
      %p73 = scmp.ne.s32.totalorder %s58, %s72
      %p74 = scmp.eq.s32.totalorder %s27, 0
      %p75 = por %p73, %p74
      %s77 = sadd.s32 %s76, 1
      %p80 = scmp.eq.s32.totalorder %s21, 1
      %p81 = scmp.ne.s32.totalorder %s76, %s78
      %p82 = scmp.eq.s32.totalorder %s21, 0
      %p83 = por %p81, %p82
      %p84 = scmp.ne.s32.totalorder %s76, %s78
      %p85 = scmp.eq.s32.totalorder %s26, 1
      %p86 = por %p84, %p85
      %p87 = scmp.ne.s32.totalorder %s78, %s79
      %p88 = scmp.eq.s32.totalorder %s26, 0
      %p89 = por %p87, %p88
      %p90 = scmp.ne.s32.totalorder %s78, %s79
      %p91 = scmp.eq.s32.totalorder %s27, 1
      %p92 = por %p90, %p91
      %p94 = scmp.ne.s32.totalorder %s79, %s93
      %p95 = scmp.eq.s32.totalorder %s27, 0
      %p96 = por %p94, %p95
      %s98 = sadd.s32 %s97, 1
      %p101 = scmp.eq.s32.totalorder %s21, 1
      %p102 = scmp.ne.s32.totalorder %s97, %s99
      %p103 = scmp.eq.s32.totalorder %s21, 0
      %p104 = por %p102, %p103
      %p105 = scmp.ne.s32.totalorder %s97, %s99
      %p106 = scmp.eq.s32.totalorder %s26, 1
      %p107 = por %p105, %p106
      %p108 = scmp.ne.s32.totalorder %s99, %s100
      %p109 = scmp.eq.s32.totalorder %s26, 0
      %p110 = por %p108, %p109
      %p111 = scmp.ne.s32.totalorder %s99, %s100
      %p112 = scmp.eq.s32.totalorder %s27, 1
      %p113 = por %p111, %p112
      %p115 = scmp.ne.s32.totalorder %s100, %s114
      %p116 = scmp.eq.s32.totalorder %s27, 0
      %p117 = por %p115, %p116
      %s119 = sadd.s32 %s118, 1
      %p122 = scmp.eq.s32.totalorder %s21, 1
      %p123 = scmp.ne.s32.totalorder %s118, %s120
      %p124 = scmp.eq.s32.totalorder %s21, 0
      %p125 = por %p123, %p124
      %p126 = scmp.ne.s32.totalorder %s118, %s120
      %p127 = scmp.eq.s32.totalorder %s26, 1
      %p128 = por %p126, %p127
      %p129 = scmp.ne.s32.totalorder %s120, %s121
      %p130 = scmp.eq.s32.totalorder %s26, 0
      %p131 = por %p129, %p130
      %p132 = scmp.ne.s32.totalorder %s120, %s121
      %p133 = scmp.eq.s32.totalorder %s27, 1
      %p134 = por %p132, %p133
      %p136 = scmp.ne.s32.totalorder %s121, %s135
      %p137 = scmp.eq.s32.totalorder %s27, 0
      %p138 = por %p136, %p137
      %s140 = sadd.s32 %s139, 1
      %p143 = scmp.eq.s32.totalorder %s21, 1
      %p144 = scmp.ne.s32.totalorder %s139, %s141
      %p145 = scmp.eq.s32.totalorder %s21, 0
      %p146 = por %p144, %p145
      %p147 = scmp.ne.s32.totalorder %s139, %s141
      %p148 = scmp.eq.s32.totalorder %s26, 1
      %p149 = por %p147, %p148
      %p150 = scmp.ne.s32.totalorder %s141, %s142
      %p151 = scmp.eq.s32.totalorder %s26, 0
      %p152 = por %p150, %p151
      %p153 = scmp.ne.s32.totalorder %s141, %s142
      %p154 = scmp.eq.s32.totalorder %s27, 1
      %p155 = por %p153, %p154
      %p157 = scmp.ne.s32.totalorder %s142, %s156
      %p158 = scmp.eq.s32.totalorder %s27, 0
      %p159 = por %p157, %p158
      %s160 = ssub.s32 %s21, %s28
      %p161 = scmp.eq.s32.totalorder %s160, 0
      %s163 = sadd.s32 %s162, 1
      %s164 = scalar_select %p161, %s162, %s163
      %p167 = pneg %p161
      %p168 = scmp.eq.s32.totalorder %s21, 1
      %p169 = por %p167, %p168
      %p170 = scmp.ne.s32.totalorder %s162, %s165
      %p171 = scmp.eq.s32.totalorder %s21, 0
      %p172 = por %p170, %p171
      %p173 = scmp.ne.s32.totalorder %s162, %s165
      %p174 = scmp.eq.s32.totalorder %s26, 1
      %p175 = por %p173, %p174
      %p176 = scmp.ne.s32.totalorder %s165, %s166
      %p177 = scmp.eq.s32.totalorder %s26, 0
      %p178 = por %p176, %p177
      %p179 = scmp.ne.s32.totalorder %s165, %s166
      %p180 = scmp.eq.s32.totalorder %s27, 1
      %p181 = por %p179, %p180
      %p183 = scmp.ne.s32.totalorder %s166, %s182
      %p184 = scmp.eq.s32.totalorder %s27, 0
      %p185 = por %p183, %p184
      %p186 = scmp.le.s32.totalorder 1, %s21
      %p187 = scmp.lt.s32.totalorder %s21, 3
      %p188 = pnand %p186, %p187
      %p189 = pneg %p188
      // Predicated region
      $region9: #{tpu_custom_call.1} parent=5 // pred_check
        _
      $region10: #{tpu_custom_call.1} parent=5 // pred_check_branch
        %191 = sbr.rel (%p188) target = $region12
      $region11: #{tpu_custom_call.1} parent=5 // pred_region
        %s192 = ssub.s32 %s21, 1
        // Predicated region
        $region13: #{tpu_custom_call.1} parent=11 // pred_check
          %p193 = pneg %p68
        $region14: #{tpu_custom_call.1} parent=11 // pred_check_branch
          %195 = sbr.rel (%p193) target = $region16
        $region15: #{tpu_custom_call.1} parent=11 // pred_region
          %197 = vsyncadd [#allocation9], 0
          %s199 = sshll.u32 %s1, 4
          %s200 = int_to_ptr.hbm [resolvable:$true] %s199
          %s201 = sshll.u32 [#allocation8], 4
          %s202 = int_to_ptr.vmem [resolvable:$true] %s201
          %204 = dma.hbm_to_vmem [thread:$0]  %s200, 16, %s202, [#allocation9]
        $region16: #{tpu_custom_call.1} parent=11 // pred_fallthru
          _
        // Predicated region
        $region17: #{tpu_custom_call.1} parent=11 // pred_check
          %p205 = pneg %p89
        $region18: #{tpu_custom_call.1} parent=11 // pred_check_branch
          %207 = sbr.rel (%p205) target = $region20
        $region19: #{tpu_custom_call.1} parent=11 // pred_region
          %209 = vsyncadd [#allocation9], 0
          %s210 = sshll.u32 %s2, 4
          %s211 = int_to_ptr.hbm [resolvable:$true] %s210
          %s212 = sshll.u32 [#allocation10], 4
          %s213 = int_to_ptr.vmem [resolvable:$true] %s212
          %218 = dma.hbm_to_vmem [thread:$0]  %s211, 3072, %s213, [#allocation9], 192, 192, 12
        $region20: #{tpu_custom_call.1} parent=11 // pred_fallthru
          _
        // Predicated region
        $region21: #{tpu_custom_call.1} parent=11 // pred_check
          %p219 = pneg %p110
        $region22: #{tpu_custom_call.1} parent=11 // pred_check_branch
          %221 = sbr.rel (%p219) target = $region24
        $region23: #{tpu_custom_call.1} parent=11 // pred_region
          %223 = vsyncadd [#allocation12], 0
          %s224 = sshll.u32 %s3, 4
          %s225 = int_to_ptr.hbm [resolvable:$true] %s224
          %s226 = sshll.u32 [#allocation11], 4
          %s227 = int_to_ptr.vmem [resolvable:$true] %s226
          %232 = dma.hbm_to_vmem [thread:$0]  %s225, 1024, %s227, [#allocation12], 64, 64, 4
        $region24: #{tpu_custom_call.1} parent=11 // pred_fallthru
          _
        // Predicated region
        $region25: #{tpu_custom_call.1} parent=11 // pred_check
          %p233 = pneg %p131
        $region26: #{tpu_custom_call.1} parent=11 // pred_check_branch
          %235 = sbr.rel (%p233) target = $region28
        $region27: #{tpu_custom_call.1} parent=11 // pred_region
          %237 = vsyncadd [#allocation12], 0
          %s238 = sshll.u32 %s4, 4
          %s239 = int_to_ptr.hbm [resolvable:$true] %s238
          %s240 = sshll.u32 [#allocation13], 4
          %s241 = int_to_ptr.vmem [resolvable:$true] %s240
          %246 = dma.hbm_to_vmem [thread:$0]  %s239, 256, %s241, [#allocation12], 128, 128, 8
        $region28: #{tpu_custom_call.1} parent=11 // pred_fallthru
          _
        // Predicated region
        $region29: #{tpu_custom_call.1} parent=11 // pred_check
          %p247 = pneg %p152
        $region30: #{tpu_custom_call.1} parent=11 // pred_check_branch
          %249 = sbr.rel (%p247) target = $region32
        $region31: #{tpu_custom_call.1} parent=11 // pred_region
          %251 = vsyncadd [#allocation15], 0
          %s252 = sshll.u32 %s5, 4
          %s253 = int_to_ptr.hbm [resolvable:$true] %s252
          %s254 = sshll.u32 [#allocation14], 4
          %s255 = int_to_ptr.vmem [resolvable:$true] %s254
          %260 = dma.hbm_to_vmem [thread:$0]  %s253, 256, %s255, [#allocation15], 128, 128, 8
        $region32: #{tpu_custom_call.1} parent=11 // pred_fallthru
          _
      $region12: #{tpu_custom_call.1} parent=5 // pred_fallthru
        _
      %p261 = scmp.lt.s32.totalorder %s21, 2
      // Predicated region
      $region33: #{tpu_custom_call.1} parent=5 // pred_check
        %p262 = pneg %p261
      $region34: #{tpu_custom_call.1} parent=5 // pred_check_branch
        %264 = sbr.rel (%p262) target = $region36
      $region35: #{tpu_custom_call.1} parent=5 // pred_region
        // Predicated region
        $region37: #{tpu_custom_call.1} parent=35 // pred_check
          %p265 = pneg %p41
        $region38: #{tpu_custom_call.1} parent=35 // pred_check_branch
          %267 = sbr.rel (%p265) target = $region40
        $region39: #{tpu_custom_call.1} parent=35 // pred_region
          %s268 = sand.u32 %s31, 1
          %s269 = scalar_lea.sflag [#allocation6], %s268
          %s270 = sand.u32 %s31, 1
          %s271 = smul.addr %s270, 16
          %s272 = scalar_lea.vmem [#allocation5], %s271
          %274 = vsyncadd %s269, 0
          %s275 = smul.addr %s21, 2
          %s276 = smul.addr %s275, 8
          %s277 = scalar_lea.hbm %s0, %s276
          %s278 = sshll.u32 %s277, 4
          %s279 = int_to_ptr.hbm [resolvable:$true] %s278
          %s280 = sshll.u32 %s272, 4
          %s281 = int_to_ptr.vmem [resolvable:$true] %s280
          %286 = dma.hbm_to_vmem [thread:$0]  %s279, 256, %s281, %s269, 128, 128, 8
        $region40: #{tpu_custom_call.1} parent=35 // pred_fallthru
          _
      $region36: #{tpu_custom_call.1} parent=5 // pred_fallthru
        _
      %p287 = scmp.le.s32.totalorder 1, %s21
      %p288 = scmp.lt.s32.totalorder %s21, 3
      %p289 = pnand %p287, %p288
      %p290 = pneg %p289
      // Predicated region
      $region41: #{tpu_custom_call.1} parent=5 // pred_check
        _
      $region42: #{tpu_custom_call.1} parent=5 // pred_check_branch
        %292 = sbr.rel (%p289) target = $region44
      $region43: #{tpu_custom_call.1} parent=5 // pred_region
        %s293 = ssub.s32 %s21, 1
        %s294 = sand.u32 %s34, 1
        %s295 = scalar_lea.sflag [#allocation6], %s294
        %s296 = sand.u32 %s34, 1
        %s297 = smul.addr %s296, 16
        %s298 = scalar_lea.vmem [#allocation5], %s297
        // Predicated region
        $region45: #{tpu_custom_call.1} parent=43 // pred_check
          %p299 = pneg %p47
        $region46: #{tpu_custom_call.1} parent=43 // pred_check_branch
          %301 = sbr.rel (%p299) target = $region48
        $region47: #{tpu_custom_call.1} parent=43 // pred_region
          %303 = dma.done %s295, 256
        $region48: #{tpu_custom_call.1} parent=43 // pred_fallthru
          _
        // Predicated region
        $region49: #{tpu_custom_call.1} parent=43 // pred_check
          %p304 = pneg %p68
        $region50: #{tpu_custom_call.1} parent=43 // pred_check_branch
          %306 = sbr.rel (%p304) target = $region52
        $region51: #{tpu_custom_call.1} parent=43 // pred_region
          %308 = dma.done [#allocation9], 16
        $region52: #{tpu_custom_call.1} parent=43 // pred_fallthru
          _
        // Predicated region
        $region53: #{tpu_custom_call.1} parent=43 // pred_check
          %p309 = pneg %p89
        $region54: #{tpu_custom_call.1} parent=43 // pred_check_branch
          %311 = sbr.rel (%p309) target = $region56
        $region55: #{tpu_custom_call.1} parent=43 // pred_region
          %313 = dma.done [#allocation9], 3072
        $region56: #{tpu_custom_call.1} parent=43 // pred_fallthru
          _
        // Predicated region
        $region57: #{tpu_custom_call.1} parent=43 // pred_check
          %p314 = pneg %p110
        $region58: #{tpu_custom_call.1} parent=43 // pred_check_branch
          %316 = sbr.rel (%p314) target = $region60
        $region59: #{tpu_custom_call.1} parent=43 // pred_region
          %318 = dma.done [#allocation12], 1024
        $region60: #{tpu_custom_call.1} parent=43 // pred_fallthru
          _
        // Predicated region
        $region61: #{tpu_custom_call.1} parent=43 // pred_check
          %p319 = pneg %p131
        $region62: #{tpu_custom_call.1} parent=43 // pred_check_branch
          %321 = sbr.rel (%p319) target = $region64
        $region63: #{tpu_custom_call.1} parent=43 // pred_region
          %323 = dma.done [#allocation12], 256
        $region64: #{tpu_custom_call.1} parent=43 // pred_fallthru
          _
        // Predicated region
        $region65: #{tpu_custom_call.1} parent=43 // pred_check
          %p324 = pneg %p152
        $region66: #{tpu_custom_call.1} parent=43 // pred_check_branch
          %326 = sbr.rel (%p324) target = $region68
        $region67: #{tpu_custom_call.1} parent=43 // pred_region
          %328 = dma.done [#allocation15], 256
        $region68: #{tpu_custom_call.1} parent=43 // pred_fallthru
          _
        %s329 = sand.u32 %s34, 1
        %s330 = scalar_lea.sflag [#allocation6], %s329
        %s331 = sand.u32 %s34, 1
        %s332 = smul.addr %s331, 16
        %s333 = scalar_lea.vmem [#allocation5], %s332
        %p334 = pneg %p47
        %p335 = pneg %p44
        %p336 = pneg %p68
        %p337 = pneg %p65
        %p338 = pneg %p89
        %p339 = pneg %p86
        %p340 = pneg %p110
        %p341 = pneg %p107
        %p342 = pneg %p131
        %p343 = pneg %p128
        %p344 = pneg %p152
        %p345 = pneg %p149
        %p346 = pneg %p178
        %p347 = pneg %p175
        %s348 = sand.u32 %s165, 1
        %s349 = scalar_lea.sflag [#allocation7], %s348
        %s350 = sand.u32 %s165, 1
        %s351 = smul.addr %s350, 16
        %s352 = scalar_lea.vmem [#allocation16], %s351
        %v354 = vld [vmem:[%s298] sm:$0xff]
        %v355 = vld [vmem:[%s298 + $0x8] sm:$0xff]
        %v356 = vld [vmem:[#allocation8] sm:$0x1]
        %v357 = vmul.f32 %v354, %v354
        %v358 = vmul.f32 %v355, %v355
        %359 = vadd.xlane.f32.xlu0 %v357
        %v360 = vpop.xlane.xlu0 %359
        %361 = vadd.xlane.f32.xlu0 %v358
        %v362 = vpop.xlane.xlu0 %361
        %v363 = vrsqrt.pop %v360
        %v364 = vmul.f32 %v363, %v360
        %v365 = vmul.f32 %v364, %v363
        %v366 = vmul.f32 0.5, %v365
        %v367 = vsub.f32 1.5, %v366
        %v368 = vmul.f32 %v363, %v367
        %v369 = vmul.f32 %v360, %v368
        %vm370 = vcmp.eq.f32.partialorder %v360, inf
        %v371 = vsel %vm370, %v360, %v369
        %vm372 = vcmp.eq.f32.partialorder %v360, 0.0
        %v373 = vand.u32 %v360, 2147483648
        %v374 = vsel %vm372, %v373, %v371
        %v375 = vrsqrt.pop %v362
        %v376 = vmul.f32 %v375, %v362
        %v377 = vmul.f32 %v376, %v375
        %v378 = vmul.f32 0.5, %v377
        %v379 = vsub.f32 1.5, %v378
        %v380 = vmul.f32 %v375, %v379
        %v381 = vmul.f32 %v362, %v380
        %vm382 = vcmp.eq.f32.partialorder %v362, inf
        %v383 = vsel %vm382, %v362, %v381
        %vm384 = vcmp.eq.f32.partialorder %v362, 0.0
        %v385 = vand.u32 %v362, 2147483648
        %v386 = vsel %vm384, %v385, %v383
        %v387 = vmul.f32 %v374, 0.088388346
        %v388 = vmul.f32 %v386, 0.088388346
        %v390 = vperm.slane %v356, 0
        %v392 = vmul.f32 %v390, %v354
        %v393 = vmul.f32 %v390, %v355
        %v394 = vadd.f32 %v387, 1e-05
        %v395 = vadd.f32 %v388, 1e-05
        %v396 = vrcp.pop %v394
        %v397 = vrcp.pop %v395
        %v398 = vmul.f32 %v392, %v396
        %v399 = vmul.f32 %v393, %v397
        %v400 = vpack.c.bf16 %v399, %v398
        %v401 = vld [vmem:[#allocation10] sm:$0xff]
        %v402 = vld [vmem:[#allocation10 + $0x8] sm:$0xf]
        %v403 = vld [vmem:[#allocation10 + $0xc] sm:$0xff]
        %v404 = vld [vmem:[#allocation10 + $0x14] sm:$0xf]
        %v405 = vld [vmem:[#allocation10 + $0x18] sm:$0xff]
        %v406 = vld [vmem:[#allocation10 + $0x20] sm:$0xf]
        %v407 = vld [vmem:[#allocation10 + $0x24] sm:$0xff]
        %v408 = vld [vmem:[#allocation10 + $0x2c] sm:$0xf]
        %v409 = vld [vmem:[#allocation10 + $0x30] sm:$0xff]
        %v410 = vld [vmem:[#allocation10 + $0x38] sm:$0xf]
        %v411 = vld [vmem:[#allocation10 + $0x3c] sm:$0xff]
        %v412 = vld [vmem:[#allocation10 + $0x44] sm:$0xf]
        %v413 = vld [vmem:[#allocation10 + $0x48] sm:$0xff]
        %v414 = vld [vmem:[#allocation10 + $0x50] sm:$0xf]
        %v415 = vld [vmem:[#allocation10 + $0x54] sm:$0xff]
        %v416 = vld [vmem:[#allocation10 + $0x5c] sm:$0xf]
        %v417 = vld [vmem:[#allocation10 + $0x60] sm:$0xff]
        %v418 = vld [vmem:[#allocation10 + $0x68] sm:$0xf]
        %v419 = vld [vmem:[#allocation10 + $0x6c] sm:$0xff]
        %v420 = vld [vmem:[#allocation10 + $0x74] sm:$0xf]
        %v421 = vld [vmem:[#allocation10 + $0x78] sm:$0xff]
        %v422 = vld [vmem:[#allocation10 + $0x80] sm:$0xf]
        %v423 = vld [vmem:[#allocation10 + $0x84] sm:$0xff]
        %v424 = vld [vmem:[#allocation10 + $0x8c] sm:$0xf]
        %v425 = vld [vmem:[#allocation10 + $0x90] sm:$0xff]
        %v426 = vld [vmem:[#allocation10 + $0x98] sm:$0xf]
        %v427 = vld [vmem:[#allocation10 + $0x9c] sm:$0xff]
        %v428 = vld [vmem:[#allocation10 + $0xa4] sm:$0xf]
        %v429 = vld [vmem:[#allocation10 + $0xa8] sm:$0xff]
        %v430 = vld [vmem:[#allocation10 + $0xb0] sm:$0xf]
        %v431 = vld [vmem:[#allocation10 + $0xb4] sm:$0xff]
        %v432 = vld [vmem:[#allocation10 + $0xbc] sm:$0xf]
        %v465 = vunpack.c.l.b16 %v401
        %v466 = vunpack.c.h.b16 %v401
        %v467 = vunpack.c.l.b16 %v402
        %v468 = vunpack.c.l.b16 %v403
        %v469 = vunpack.c.h.b16 %v403
        %v470 = vunpack.c.l.b16 %v404
        %v471 = vunpack.c.l.b16 %v405
        %v472 = vunpack.c.h.b16 %v405
        %v473 = vunpack.c.l.b16 %v406
        %v474 = vunpack.c.l.b16 %v407
        %v475 = vunpack.c.h.b16 %v407
        %v476 = vunpack.c.l.b16 %v408
        %v477 = vunpack.c.l.b16 %v409
        %v478 = vunpack.c.h.b16 %v409
        %v479 = vunpack.c.l.b16 %v410
        %v480 = vunpack.c.l.b16 %v411
        %v481 = vunpack.c.h.b16 %v411
        %v482 = vunpack.c.l.b16 %v412
        %v483 = vunpack.c.l.b16 %v413
        %v484 = vunpack.c.h.b16 %v413
        %v485 = vunpack.c.l.b16 %v414
        %v486 = vunpack.c.l.b16 %v415
        %v487 = vunpack.c.h.b16 %v415
        %v488 = vunpack.c.l.b16 %v416
        %v489 = vunpack.c.l.b16 %v417
        %v490 = vunpack.c.h.b16 %v417
        %v491 = vunpack.c.l.b16 %v418
        %v492 = vunpack.c.l.b16 %v419
        %v493 = vunpack.c.h.b16 %v419
        %v494 = vunpack.c.l.b16 %v420
        %v495 = vunpack.c.l.b16 %v421
        %v496 = vunpack.c.h.b16 %v421
        %v497 = vunpack.c.l.b16 %v422
        %v498 = vunpack.c.l.b16 %v423
        %v499 = vunpack.c.h.b16 %v423
        %v500 = vunpack.c.l.b16 %v424
        %v501 = vunpack.c.l.b16 %v425
        %v502 = vunpack.c.h.b16 %v425
        %v503 = vunpack.c.l.b16 %v426
        %v504 = vunpack.c.l.b16 %v427
        %v505 = vunpack.c.h.b16 %v427
        %v506 = vunpack.c.l.b16 %v428
        %v507 = vunpack.c.l.b16 %v429
        %v508 = vunpack.c.h.b16 %v429
        %v509 = vunpack.c.l.b16 %v430
        %v510 = vunpack.c.l.b16 %v431
        %v511 = vunpack.c.h.b16 %v431
        %v512 = vunpack.c.l.b16 %v432
        %v513 = vpack.c.b16 %v468, %v465
        %v514 = vpack.c.b16 %v469, %v466
        %v515 = vpack.c.b16 %v470, %v467
        %v516 = vpack.c.b16 %v474, %v471
        %v517 = vpack.c.b16 %v475, %v472
        %v518 = vpack.c.b16 %v476, %v473
        %v519 = vpack.c.b16 %v480, %v477
        %v520 = vpack.c.b16 %v481, %v478
        %v521 = vpack.c.b16 %v482, %v479
        %v522 = vpack.c.b16 %v486, %v483
        %v523 = vpack.c.b16 %v487, %v484
        %v524 = vpack.c.b16 %v488, %v485
        %v525 = vpack.c.b16 %v492, %v489
        %v526 = vpack.c.b16 %v493, %v490
        %v527 = vpack.c.b16 %v494, %v491
        %v528 = vpack.c.b16 %v498, %v495
        %v529 = vpack.c.b16 %v499, %v496
        %v530 = vpack.c.b16 %v500, %v497
        %v531 = vpack.c.b16 %v504, %v501
        %v532 = vpack.c.b16 %v505, %v502
        %v533 = vpack.c.b16 %v506, %v503
        %v534 = vpack.c.b16 %v510, %v507
        %v535 = vpack.c.b16 %v511, %v508
        %v536 = vpack.c.b16 %v512, %v509
        %561 = vmatpush.bf16.msra.mxu0 %v534
        %562 = vmatpush.bf16.msra.mxu0 %v531
        %563 = vmatpush.bf16.msra.mxu0 %v528
        %564 = vmatpush.bf16.msra.mxu0 %v525
        %565 = vmatpush.bf16.msra.mxu0 %v522
        %566 = vmatpush.bf16.msra.mxu0 %v519
        %567 = vmatpush.bf16.msra.mxu0 %v516
        %568 = vmatpush.bf16.msra.mxu0 %v513
        %569 = vmatmul.bf16.gmra.mxu0 %v400
        %v570 = vpop.f32.mrf.mxu0
        %v571 = vadd.f32 0.0, %v570
        %v572 = vpop.f32.mrf.mxu0
        %v573 = vadd.f32 0.0, %v572
        %574 = vdwg.mxu0
        %575 = vmatpush.bf16.msra.mxu0 %v535
        %576 = vmatpush.bf16.msra.mxu0 %v532
        %577 = vmatpush.bf16.msra.mxu0 %v529
        %578 = vmatpush.bf16.msra.mxu0 %v526
        %579 = vmatpush.bf16.msra.mxu0 %v523
        %580 = vmatpush.bf16.msra.mxu0 %v520
        %581 = vmatpush.bf16.msra.mxu0 %v517
        %582 = vmatpush.bf16.msra.mxu0 %v514
        %583 = vmatmul.bf16.gmra.mxu0 %v400
        %v584 = vpop.f32.mrf.mxu0
        %v585 = vadd.f32 0.0, %v584
        %v586 = vpop.f32.mrf.mxu0
        %v587 = vadd.f32 0.0, %v586
        %588 = vdwg.mxu0
        %589 = vmatpush.bf16.msra.mxu0 %v536
        %590 = vmatpush.bf16.msra.mxu0 %v533
        %591 = vmatpush.bf16.msra.mxu0 %v530
        %592 = vmatpush.bf16.msra.mxu0 %v527
        %593 = vmatpush.bf16.msra.mxu0 %v524
        %594 = vmatpush.bf16.msra.mxu0 %v521
        %595 = vmatpush.bf16.msra.mxu0 %v518
        %596 = vmatpush.bf16.msra.mxu0 %v515
        %597 = vmatmul.bf16.gmra.mxu0 %v400
        %v598 = vpop.f32.mrf.mxu0
        %v599 = vadd.f32 0.0, %v598
        %v600 = vpop.f32.mrf.mxu0
        %v601 = vadd.f32 0.0, %v600
        %602 = vdwg.mxu0
        %v603 = vpack.c.bf16 %v599, %v599
        %v604 = vpack.c.bf16 %v601, %v601
        %607 = vrot.lane.b32.xlu0 %v571, 112
        %v608 = vpop.permute.xlu0 %607
        %609 = vrot.lane.b32.xlu0 %v573, 112
        %v610 = vpop.permute.xlu0 %609
        %vm613 = vcmask 130048
        %614 = vst.msk [vmem:[#allocation2] sm:$0xff] %vm613, %v608
        %615 = vst.msk [vmem:[#allocation2 + $0x8] sm:$0xff] %vm613, %v610
        %616 = vrot.lane.b32.xlu0 %v571, 16
        %v617 = vpop.permute.xlu0 %616
        %618 = vrot.lane.b32.xlu0 %v573, 16
        %v619 = vpop.permute.xlu0 %618
        %vm622 = vcmask 261248
        %623 = vst.msk [vmem:[#allocation2] sm:$0xff] %vm622, %v617
        %624 = vst.msk [vmem:[#allocation2 + $0x8] sm:$0xff] %vm622, %v619
        %627 = vrot.lane.b32.xlu0 %v585, 112
        %v628 = vpop.permute.xlu0 %627
        %629 = vrot.lane.b32.xlu0 %v587, 112
        %v630 = vpop.permute.xlu0 %629
        %633 = vst.msk [vmem:[#allocation3] sm:$0xff] %vm613, %v628
        %634 = vst.msk [vmem:[#allocation3 + $0x8] sm:$0xff] %vm613, %v630
        %635 = vrot.lane.b32.xlu0 %v585, 16
        %v636 = vpop.permute.xlu0 %635
        %637 = vrot.lane.b32.xlu0 %v587, 16
        %v638 = vpop.permute.xlu0 %637
        %641 = vst.msk [vmem:[#allocation3] sm:$0xff] %vm622, %v636
        %642 = vst.msk [vmem:[#allocation3 + $0x8] sm:$0xff] %vm622, %v638
        %vm643 = vcmask 392448
        %644 = vst.msk [vmem:[#allocation2] sm:$0xff] %vm643, %v608
        %645 = vst.msk [vmem:[#allocation2 + $0x8] sm:$0xff] %vm643, %v610
        %vm646 = vcmask 523648
        %647 = vst.msk [vmem:[#allocation2] sm:$0xff] %vm646, %v617
        %648 = vst.msk [vmem:[#allocation2 + $0x8] sm:$0xff] %vm646, %v619
        %649 = vst.msk [vmem:[#allocation3] sm:$0xff] %vm643, %v628
        %650 = vst.msk [vmem:[#allocation3 + $0x8] sm:$0xff] %vm643, %v630
        %651 = vst.msk [vmem:[#allocation3] sm:$0xff] %vm646, %v636
        %652 = vst.msk [vmem:[#allocation3 + $0x8] sm:$0xff] %vm646, %v638
        %vm653 = vcmask 654848
        %654 = vst.msk [vmem:[#allocation2] sm:$0xff] %vm653, %v608
        %655 = vst.msk [vmem:[#allocation2 + $0x8] sm:$0xff] %vm653, %v610
        %vm656 = vcmask 786048
        %657 = vst.msk [vmem:[#allocation2] sm:$0xff] %vm656, %v617
        %658 = vst.msk [vmem:[#allocation2 + $0x8] sm:$0xff] %vm656, %v619
        %659 = vst.msk [vmem:[#allocation3] sm:$0xff] %vm653, %v628
        %660 = vst.msk [vmem:[#allocation3 + $0x8] sm:$0xff] %vm653, %v630
        %661 = vst.msk [vmem:[#allocation3] sm:$0xff] %vm656, %v636
        %662 = vst.msk [vmem:[#allocation3 + $0x8] sm:$0xff] %vm656, %v638
        %vm663 = vcmask 917248
        %664 = vst.msk [vmem:[#allocation2] sm:$0xff] %vm663, %v608
        %665 = vst.msk [vmem:[#allocation2 + $0x8] sm:$0xff] %vm663, %v610
        %vm666 = vcmask 1048448
        %667 = vst.msk [vmem:[#allocation2] sm:$0xff] %vm666, %v617
        %668 = vst.msk [vmem:[#allocation2 + $0x8] sm:$0xff] %vm666, %v619
        %669 = vst.msk [vmem:[#allocation3] sm:$0xff] %vm663, %v628
        %670 = vst.msk [vmem:[#allocation3 + $0x8] sm:$0xff] %vm663, %v630
        %671 = vst.msk [vmem:[#allocation3] sm:$0xff] %vm666, %v636
        %672 = vst.msk [vmem:[#allocation3 + $0x8] sm:$0xff] %vm666, %v638
        %v673 = vld [vmem:[#allocation13] sm:$0xff]
        %v674 = vld [vmem:[#allocation13 + $0x8] sm:$0xff]
        %v675 = vld [vmem:[#allocation14] sm:$0xff]
        %v676 = vld [vmem:[#allocation14 + $0x8] sm:$0xff]
        %v677 = vmul.f32 %v571, %v673
        %v678 = vmul.f32 %v573, %v674
        %v679 = vld [vmem:[#allocation2] sm:$0xff]
        %v680 = vld [vmem:[#allocation2 + $0x8] sm:$0xff]
        %v681 = vmul.f32 %v679, %v675
        %v682 = vmul.f32 %v680, %v676
        %v683 = vadd.f32 %v677, %v681
        %v684 = vadd.f32 %v678, %v682
        %v685 = vmul.f32 %v683, 0.17677669
        %v686 = vmul.f32 %v684, 0.17677669
        %v687 = vpack.c.bf16 %v685, %v685
        %v688 = vpack.c.bf16 %v686, %v686
        %v689 = vmul.f32 %v585, %v673
        %v690 = vmul.f32 %v587, %v674
        %v691 = vld [vmem:[#allocation3] sm:$0xff]
        %v692 = vld [vmem:[#allocation3 + $0x8] sm:$0xff]
        %v693 = vmul.f32 %v691, %v675
        %v694 = vmul.f32 %v692, %v676
        %v695 = vadd.f32 %v689, %v693
        %v696 = vadd.f32 %v690, %v694
        %v697 = vpack.c.bf16 %v695, %v695
        %v698 = vpack.c.bf16 %v696, %v696
        %v699 = vlaneseq
        %v700 = vshrl.u32 %v699, 7
        %v701 = vadd.s32 %v700, 8
        %v702 = vlaneseq
        %v703 = vand.u32 %v702, 127
        %vm704 = vcmp.le.s32.totalorder %v703, %v700
        %vm705 = vcmp.le.s32.totalorder %v703, %v701
        %v708 = vunpack.c.l.b16 %v687
        %v709 = vunpack.c.l.b16 %v688
        %v710 = vpack.c.b16 %v709, %v708
        %v713 = vunpack.c.l.b16 %v697
        %v714 = vunpack.c.l.b16 %v698
        %v715 = vpack.c.b16 %v714, %v713
        %vm716 = vcmask 261120
        %v718 = vsel %vm716, %v710, 0
        %v721 = vsel %vm716, %v715, 0
        %723 = vmatpush.bf16.xpose.msra.mxu0 0
        %724 = vmatpush.bf16.xpose.msra.mxu0 0
        %725 = vmatpush.bf16.xpose.msra.mxu0 0
        %726 = vmatpush.bf16.xpose.msra.mxu0 0
        %727 = vmatpush.bf16.xpose.msra.mxu0 0
        %728 = vmatpush.bf16.xpose.msra.mxu0 0
        %729 = vmatpush.bf16.xpose.msra.mxu0 0
        %730 = vmatpush.bf16.xpose.msra.mxu0 %v721
        %731 = vmatmul.bf16.gmra.mxu0 %v718
        %v732 = vpop.f32.mrf.mxu0
        %v733 = vadd.f32 0.0, %v732
        %v734 = vpop.f32.mrf.mxu0
        %v735 = vadd.f32 0.0, %v734
        %736 = vdwg.mxu0
        %v737 = vsel %vm704, %v733, -inf
        %v738 = vsel %vm705, %v735, -inf
        %v739 = vsel %vm613, %v737, -inf
        %740 = vmax.xlane.f32.xlu0 %v739
        %v741 = vpop.xlane.xlu0 %740
        %v742 = vsel %vm613, %v738, -inf
        %743 = vmax.xlane.f32.xlu0 %v742
        %v744 = vpop.xlane.xlu0 %743
        %v745 = vsub.f32 %v737, %v741
        %v746 = vsub.f32 %v738, %v744
        %v747 = vmul.f32 %v745, 1.442695
        %v748 = vpow.pop %v747
        %v749 = vmul.f32 %v746, 1.442695
        %v750 = vpow.pop %v749
        %v751 = vsel %vm613, %v748, 0.0
        %752 = vadd.xlane.f32.xlu0 %v751
        %v753 = vpop.xlane.xlu0 %752
        %v754 = vsel %vm613, %v750, 0.0
        %755 = vadd.xlane.f32.xlu0 %v754
        %v756 = vpop.xlane.xlu0 %755
        %v757 = vrcp.pop %v753
        %v758 = vrcp.pop %v756
        %v759 = vmul.f32 %v748, %v757
        %v760 = vmul.f32 %v750, %v758
        %v761 = vpack.c.bf16 %v760, %v759
        %v764 = vunpack.c.l.b16 %v603
        %v765 = vunpack.c.l.b16 %v604
        %v766 = vpack.c.b16 %v765, %v764
        %v769 = vsel %vm613, %v761, 0
        %771 = vmatpush.bf16.msra.mxu0 0
        %772 = vmatpush.bf16.msra.mxu0 0
        %773 = vmatpush.bf16.msra.mxu0 0
        %774 = vmatpush.bf16.msra.mxu0 0
        %775 = vmatpush.bf16.msra.mxu0 0
        %776 = vmatpush.bf16.msra.mxu0 0
        %777 = vmatpush.bf16.msra.mxu0 0
        %778 = vmatpush.bf16.msra.mxu0 %v766
        %779 = vmatmul.bf16.gmra.mxu0 %v769
        %v780 = vpop.f32.mrf.mxu0
        %v781 = vadd.f32 0.0, %v780
        %v782 = vpop.f32.mrf.mxu0
        %v783 = vadd.f32 0.0, %v782
        %784 = vdwg.mxu0
        %785 = vst.msk [vmem:[#allocation4] sm:$0xff] %vm716, %v781
        %786 = vst.msk [vmem:[#allocation4 + $0x8] sm:$0xff] %vm716, %v783
        %787 = vrot.lane.b32.xlu0 %v710, 96
        %v788 = vpop.permute.xlu0 %787
        %789 = vrot.lane.b32.xlu0 %v715, 96
        %v790 = vpop.permute.xlu0 %789
        %v792 = vsel %vm716, %v788, 0
        %v795 = vsel %vm716, %v790, 0
        %797 = vmatpush.bf16.xpose.msra.mxu0 0
        %798 = vmatpush.bf16.xpose.msra.mxu0 0
        %799 = vmatpush.bf16.xpose.msra.mxu0 0
        %800 = vmatpush.bf16.xpose.msra.mxu0 0
        %801 = vmatpush.bf16.xpose.msra.mxu0 0
        %802 = vmatpush.bf16.xpose.msra.mxu0 0
        %803 = vmatpush.bf16.xpose.msra.mxu0 0
        %804 = vmatpush.bf16.xpose.msra.mxu0 %v795
        %805 = vmatmul.bf16.gmra.mxu0 %v792
        %v806 = vpop.f32.mrf.mxu0
        %v807 = vadd.f32 0.0, %v806
        %v808 = vpop.f32.mrf.mxu0
        %v809 = vadd.f32 0.0, %v808
        %810 = vdwg.mxu0
        %v811 = vsel %vm704, %v807, -inf
        %v812 = vsel %vm705, %v809, -inf
        %v813 = vsel %vm613, %v811, -inf
        %814 = vmax.xlane.f32.xlu0 %v813
        %v815 = vpop.xlane.xlu0 %814
        %v816 = vsel %vm613, %v812, -inf
        %817 = vmax.xlane.f32.xlu0 %v816
        %v818 = vpop.xlane.xlu0 %817
        %v819 = vsub.f32 %v811, %v815
        %v820 = vsub.f32 %v812, %v818
        %v821 = vmul.f32 %v819, 1.442695
        %v822 = vpow.pop %v821
        %v823 = vmul.f32 %v820, 1.442695
        %v824 = vpow.pop %v823
        %v825 = vsel %vm613, %v822, 0.0
        %826 = vadd.xlane.f32.xlu0 %v825
        %v827 = vpop.xlane.xlu0 %826
        %v828 = vsel %vm613, %v824, 0.0
        %829 = vadd.xlane.f32.xlu0 %v828
        %v830 = vpop.xlane.xlu0 %829
        %v831 = vrcp.pop %v827
        %v832 = vrcp.pop %v830
        %v833 = vmul.f32 %v822, %v831
        %v834 = vmul.f32 %v824, %v832
        %v835 = vpack.c.bf16 %v834, %v833
        %836 = vrot.lane.b32.xlu0 %v766, 96
        %v837 = vpop.permute.xlu0 %836
        %v840 = vsel %vm613, %v835, 0
        %842 = vmatpush.bf16.msra.mxu0 0
        %843 = vmatpush.bf16.msra.mxu0 0
        %844 = vmatpush.bf16.msra.mxu0 0
        %845 = vmatpush.bf16.msra.mxu0 0
        %846 = vmatpush.bf16.msra.mxu0 0
        %847 = vmatpush.bf16.msra.mxu0 0
        %848 = vmatpush.bf16.msra.mxu0 0
        %849 = vmatpush.bf16.msra.mxu0 %v837
        %850 = vmatmul.bf16.gmra.mxu0 %v840
        %v851 = vpop.f32.mrf.mxu0
        %v852 = vadd.f32 0.0, %v851
        %v853 = vpop.f32.mrf.mxu0
        %v854 = vadd.f32 0.0, %v853
        %855 = vdwg.mxu0
        %858 = vrot.lane.b32.xlu0 %v852, 32
        %v859 = vpop.permute.xlu0 %858
        %860 = vrot.lane.b32.xlu0 %v854, 32
        %v861 = vpop.permute.xlu0 %860
        %vm864 = vcmask 523520
        %865 = vst.msk [vmem:[#allocation4] sm:$0xff] %vm864, %v859
        %866 = vst.msk [vmem:[#allocation4 + $0x8] sm:$0xff] %vm864, %v861
        %867 = vrot.lane.b32.xlu0 %v710, 64
        %v868 = vpop.permute.xlu0 %867
        %869 = vrot.lane.b32.xlu0 %v715, 64
        %v870 = vpop.permute.xlu0 %869
        %v872 = vsel %vm716, %v868, 0
        %v875 = vsel %vm716, %v870, 0
        %877 = vmatpush.bf16.xpose.msra.mxu0 0
        %878 = vmatpush.bf16.xpose.msra.mxu0 0
        %879 = vmatpush.bf16.xpose.msra.mxu0 0
        %880 = vmatpush.bf16.xpose.msra.mxu0 0
        %881 = vmatpush.bf16.xpose.msra.mxu0 0
        %882 = vmatpush.bf16.xpose.msra.mxu0 0
        %883 = vmatpush.bf16.xpose.msra.mxu0 0
        %884 = vmatpush.bf16.xpose.msra.mxu0 %v875
        %885 = vmatmul.bf16.gmra.mxu0 %v872
        %v886 = vpop.f32.mrf.mxu0
        %v887 = vadd.f32 0.0, %v886
        %v888 = vpop.f32.mrf.mxu0
        %v889 = vadd.f32 0.0, %v888
        %890 = vdwg.mxu0
        %v891 = vsel %vm704, %v887, -inf
        %v892 = vsel %vm705, %v889, -inf
        %v893 = vsel %vm613, %v891, -inf
        %894 = vmax.xlane.f32.xlu0 %v893
        %v895 = vpop.xlane.xlu0 %894
        %v896 = vsel %vm613, %v892, -inf
        %897 = vmax.xlane.f32.xlu0 %v896
        %v898 = vpop.xlane.xlu0 %897
        %v899 = vsub.f32 %v891, %v895
        %v900 = vsub.f32 %v892, %v898
        %v901 = vmul.f32 %v899, 1.442695
        %v902 = vpow.pop %v901
        %v903 = vmul.f32 %v900, 1.442695
        %v904 = vpow.pop %v903
        %v905 = vsel %vm613, %v902, 0.0
        %906 = vadd.xlane.f32.xlu0 %v905
        %v907 = vpop.xlane.xlu0 %906
        %v908 = vsel %vm613, %v904, 0.0
        %909 = vadd.xlane.f32.xlu0 %v908
        %v910 = vpop.xlane.xlu0 %909
        %v911 = vrcp.pop %v907
        %v912 = vrcp.pop %v910
        %v913 = vmul.f32 %v902, %v911
        %v914 = vmul.f32 %v904, %v912
        %v915 = vpack.c.bf16 %v914, %v913
        %916 = vrot.lane.b32.xlu0 %v766, 64
        %v917 = vpop.permute.xlu0 %916
        %v920 = vsel %vm613, %v915, 0
        %922 = vmatpush.bf16.msra.mxu0 0
        %923 = vmatpush.bf16.msra.mxu0 0
        %924 = vmatpush.bf16.msra.mxu0 0
        %925 = vmatpush.bf16.msra.mxu0 0
        %926 = vmatpush.bf16.msra.mxu0 0
        %927 = vmatpush.bf16.msra.mxu0 0
        %928 = vmatpush.bf16.msra.mxu0 0
        %929 = vmatpush.bf16.msra.mxu0 %v917
        %930 = vmatmul.bf16.gmra.mxu0 %v920
        %v931 = vpop.f32.mrf.mxu0
        %v932 = vadd.f32 0.0, %v931
        %v933 = vpop.f32.mrf.mxu0
        %v934 = vadd.f32 0.0, %v933
        %935 = vdwg.mxu0
        %938 = vrot.lane.b32.xlu0 %v932, 64
        %v939 = vpop.permute.xlu0 %938
        %940 = vrot.lane.b32.xlu0 %v934, 64
        %v941 = vpop.permute.xlu0 %940
        %vm944 = vcmask 785920
        %945 = vst.msk [vmem:[#allocation4] sm:$0xff] %vm944, %v939
        %946 = vst.msk [vmem:[#allocation4 + $0x8] sm:$0xff] %vm944, %v941
        %947 = vrot.lane.b32.xlu0 %v710, 32
        %v948 = vpop.permute.xlu0 %947
        %949 = vrot.lane.b32.xlu0 %v715, 32
        %v950 = vpop.permute.xlu0 %949
        %v952 = vsel %vm716, %v948, 0
        %v955 = vsel %vm716, %v950, 0
        %957 = vmatpush.bf16.xpose.msra.mxu0 0
        %958 = vmatpush.bf16.xpose.msra.mxu0 0
        %959 = vmatpush.bf16.xpose.msra.mxu0 0
        %960 = vmatpush.bf16.xpose.msra.mxu0 0
        %961 = vmatpush.bf16.xpose.msra.mxu0 0
        %962 = vmatpush.bf16.xpose.msra.mxu0 0
        %963 = vmatpush.bf16.xpose.msra.mxu0 0
        %964 = vmatpush.bf16.xpose.msra.mxu0 %v955
        %965 = vmatmul.bf16.gmra.mxu0 %v952
        %v966 = vpop.f32.mrf.mxu0
        %v967 = vadd.f32 0.0, %v966
        %v968 = vpop.f32.mrf.mxu0
        %v969 = vadd.f32 0.0, %v968
        %970 = vdwg.mxu0
        %v971 = vsel %vm704, %v967, -inf
        %v972 = vsel %vm705, %v969, -inf
        %v973 = vsel %vm613, %v971, -inf
        %974 = vmax.xlane.f32.xlu0 %v973
        %v975 = vpop.xlane.xlu0 %974
        %v976 = vsel %vm613, %v972, -inf
        %977 = vmax.xlane.f32.xlu0 %v976
        %v978 = vpop.xlane.xlu0 %977
        %v979 = vsub.f32 %v971, %v975
        %v980 = vsub.f32 %v972, %v978
        %v981 = vmul.f32 %v979, 1.442695
        %v982 = vpow.pop %v981
        %v983 = vmul.f32 %v980, 1.442695
        %v984 = vpow.pop %v983
        %v985 = vsel %vm613, %v982, 0.0
        %986 = vadd.xlane.f32.xlu0 %v985
        %v987 = vpop.xlane.xlu0 %986
        %v988 = vsel %vm613, %v984, 0.0
        %989 = vadd.xlane.f32.xlu0 %v988
        %v990 = vpop.xlane.xlu0 %989
        %v991 = vrcp.pop %v987
        %v992 = vrcp.pop %v990
        %v993 = vmul.f32 %v982, %v991
        %v994 = vmul.f32 %v984, %v992
        %v995 = vpack.c.bf16 %v994, %v993
        %996 = vrot.lane.b32.xlu0 %v766, 32
        %v997 = vpop.permute.xlu0 %996
        %v1000 = vsel %vm613, %v995, 0
        %1002 = vmatpush.bf16.msra.mxu0 0
        %1003 = vmatpush.bf16.msra.mxu0 0
        %1004 = vmatpush.bf16.msra.mxu0 0
        %1005 = vmatpush.bf16.msra.mxu0 0
        %1006 = vmatpush.bf16.msra.mxu0 0
        %1007 = vmatpush.bf16.msra.mxu0 0
        %1008 = vmatpush.bf16.msra.mxu0 0
        %1009 = vmatpush.bf16.msra.mxu0 %v997
        %1010 = vmatmul.bf16.gmra.mxu0 %v1000
        %v1011 = vpop.f32.mrf.mxu0
        %v1012 = vadd.f32 0.0, %v1011
        %v1013 = vpop.f32.mrf.mxu0
        %v1014 = vadd.f32 0.0, %v1013
        %1015 = vdwg.mxu0
        %1018 = vrot.lane.b32.xlu0 %v1012, 96
        %v1019 = vpop.permute.xlu0 %1018
        %1020 = vrot.lane.b32.xlu0 %v1014, 96
        %v1021 = vpop.permute.xlu0 %1020
        %vm1024 = vcmask 1048320
        %1025 = vst.msk [vmem:[#allocation4] sm:$0xff] %vm1024, %v1019
        %1026 = vst.msk [vmem:[#allocation4 + $0x8] sm:$0xff] %vm1024, %v1021
        %v1027 = vld [vmem:[#allocation4] sm:$0xff]
        %v1028 = vld [vmem:[#allocation4 + $0x8] sm:$0xff]
        %v1029 = vpack.c.bf16 %v1028, %v1027
        %v1030 = vld [vmem:[#allocation11] sm:$0xf]
        %v1031 = vld [vmem:[#allocation11 + $0x4] sm:$0xf]
        %v1032 = vld [vmem:[#allocation11 + $0x8] sm:$0xf]
        %v1033 = vld [vmem:[#allocation11 + $0xc] sm:$0xf]
        %v1034 = vld [vmem:[#allocation11 + $0x10] sm:$0xf]
        %v1035 = vld [vmem:[#allocation11 + $0x14] sm:$0xf]
        %v1036 = vld [vmem:[#allocation11 + $0x18] sm:$0xf]
        %v1037 = vld [vmem:[#allocation11 + $0x1c] sm:$0xf]
        %v1038 = vld [vmem:[#allocation11 + $0x20] sm:$0xf]
        %v1039 = vld [vmem:[#allocation11 + $0x24] sm:$0xf]
        %v1040 = vld [vmem:[#allocation11 + $0x28] sm:$0xf]
        %v1041 = vld [vmem:[#allocation11 + $0x2c] sm:$0xf]
        %v1042 = vld [vmem:[#allocation11 + $0x30] sm:$0xf]
        %v1043 = vld [vmem:[#allocation11 + $0x34] sm:$0xf]
        %v1044 = vld [vmem:[#allocation11 + $0x38] sm:$0xf]
        %v1045 = vld [vmem:[#allocation11 + $0x3c] sm:$0xf]
        %v1062 = vunpack.c.l.b16 %v1030
        %v1063 = vunpack.c.l.b16 %v1031
        %v1064 = vunpack.c.l.b16 %v1032
        %v1065 = vunpack.c.l.b16 %v1033
        %v1066 = vunpack.c.l.b16 %v1034
        %v1067 = vunpack.c.l.b16 %v1035
        %v1068 = vunpack.c.l.b16 %v1036
        %v1069 = vunpack.c.l.b16 %v1037
        %v1070 = vunpack.c.l.b16 %v1038
        %v1071 = vunpack.c.l.b16 %v1039
        %v1072 = vunpack.c.l.b16 %v1040
        %v1073 = vunpack.c.l.b16 %v1041
        %v1074 = vunpack.c.l.b16 %v1042
        %v1075 = vunpack.c.l.b16 %v1043
        %v1076 = vunpack.c.l.b16 %v1044
        %v1077 = vunpack.c.l.b16 %v1045
        %v1078 = vpack.c.b16 %v1063, %v1062
        %v1079 = vpack.c.b16 %v1065, %v1064
        %v1080 = vpack.c.b16 %v1067, %v1066
        %v1081 = vpack.c.b16 %v1069, %v1068
        %v1082 = vpack.c.b16 %v1071, %v1070
        %v1083 = vpack.c.b16 %v1073, %v1072
        %v1084 = vpack.c.b16 %v1075, %v1074
        %v1085 = vpack.c.b16 %v1077, %v1076
        %1094 = vmatpush.bf16.msra.mxu0 %v1085
        %1095 = vmatpush.bf16.msra.mxu0 %v1084
        %1096 = vmatpush.bf16.msra.mxu0 %v1083
        %1097 = vmatpush.bf16.msra.mxu0 %v1082
        %1098 = vmatpush.bf16.msra.mxu0 %v1081
        %1099 = vmatpush.bf16.msra.mxu0 %v1080
        %1100 = vmatpush.bf16.msra.mxu0 %v1079
        %1101 = vmatpush.bf16.msra.mxu0 %v1078
        %1102 = vmatmul.bf16.gmra.mxu0 %v1029
        %v1103 = vpop.f32.mrf.mxu0
        %v1104 = vadd.f32 0.0, %v1103
        %v1105 = vpop.f32.mrf.mxu0
        %v1106 = vadd.f32 0.0, %v1105
        %1107 = vdwg.mxu0
        %v1108 = vadd.f32 %v354, %v1104
        %v1109 = vadd.f32 %v355, %v1106
        %1110 = vst [vmem:[%s352] sm:$0xff] %v1108
        %1111 = vst [vmem:[%s352 + $0x8] sm:$0xff] %v1109
        %s1112 = sand.u32 %s165, 1
        %s1113 = scalar_lea.sflag [#allocation7], %s1112
        %s1114 = sand.u32 %s165, 1
        %s1115 = smul.addr %s1114, 16
        %s1116 = scalar_lea.vmem [#allocation16], %s1115
        // Predicated region
        $region69: #{tpu_custom_call.1} parent=43 // pred_check
          %p1117 = pneg %p175
        $region70: #{tpu_custom_call.1} parent=43 // pred_check_branch
          %1119 = sbr.rel (%p1117) target = $region72
        $region71: #{tpu_custom_call.1} parent=43 // pred_region
          %1121 = vsyncadd %s1113, 0
          %s1122 = smul.addr %s26, 2
          %s1123 = smul.addr %s1122, 8
          %s1124 = scalar_lea.hbm %s6, %s1123
          %s1125 = sshll.u32 %s1116, 4
          %s1126 = int_to_ptr.vmem [resolvable:$true] %s1125
          %s1127 = sshll.u32 %s1124, 4
          %s1128 = int_to_ptr.hbm [resolvable:$true] %s1127
          %1133 = dma.vmem_to_hbm [thread:$0]  %s1126, 256, %s1128, %s1113, 128, 128, 8
        $region72: #{tpu_custom_call.1} parent=43 // pred_fallthru
          _
      $region44: #{tpu_custom_call.1} parent=5 // pred_fallthru
        _
      %p1134 = scmp.le.s32.totalorder 2, %s21
      // Predicated region
      $region73: #{tpu_custom_call.1} parent=5 // pred_check
        %p1135 = pneg %p1134
      $region74: #{tpu_custom_call.1} parent=5 // pred_check_branch
        %1137 = sbr.rel (%p1135) target = $region76
      $region75: #{tpu_custom_call.1} parent=5 // pred_region
        %s1138 = ssub.s32 %s21, 2
        // Predicated region
        $region77: #{tpu_custom_call.1} parent=75 // pred_check
          %p1139 = pneg %p181
        $region78: #{tpu_custom_call.1} parent=75 // pred_check_branch
          %1141 = sbr.rel (%p1139) target = $region80
        $region79: #{tpu_custom_call.1} parent=75 // pred_region
          %s1142 = sand.u32 %s166, 1
          %s1143 = scalar_lea.sflag [#allocation7], %s1142
          %s1144 = sand.u32 %s166, 1
          %s1145 = smul.addr %s1144, 16
          %s1146 = scalar_lea.vmem [#allocation16], %s1145
          %1148 = dma.done %s1143, 256
        $region80: #{tpu_custom_call.1} parent=75 // pred_fallthru
          _
      $region76: #{tpu_custom_call.1} parent=5 // pred_fallthru
        _
    $region6: #{tpu_custom_call.1} parent=1 // loop_footer
      %s25 = sadd.s32 1, %s21
    $region7: #{tpu_custom_call.1} parent=1 // loop_footer_branch
      %20 = sbr.rel target = $region3
    $region8: #{tpu_custom_call.1} parent=1 // loop_exit
      _
    %1149 = vsyncpa [#allocation6], 1
    %s1150 = scalar_lea.sflag [#allocation6], 1
    %1151 = vsyncpa %s1150, 1
    %1152 = vsyncpa [#allocation9], 1
    %1153 = vsyncpa [#allocation12], 1
    %1154 = vsyncpa [#allocation15], 1
    %1155 = vsyncpa [#allocation7], 1
    %s1156 = scalar_lea.sflag [#allocation7], 1
    %1157 = vsyncpa %s1156, 1

</llo_original>
